<compile_context>
chip_gen: v7x
topology: tpu7x:2x2x1
jax: 0.10.0
libtpu: 0.0.40
codegen_flags: <defaults>
</compile_context>

<pallas_src>
import numpy as np
import jax
import jax.numpy as jnp
from jax.experimental import pallas as pl
from jax.experimental.pallas import tpu as pltpu

LEAKY_SLOPE = 0.01
SCALES = (1.0, 2.0, 3.0, 1.0, 4.0)   # scale_list[0:5] actually used in forward
_HP = jax.lax.Precision.HIGHEST       # precision chosen, not incidental
_TILE_CAP = 4096                      # lanes per grid step (VMEM-safe on v5e/v6e/v7x)


def potential_energy_kernel(x_ref, w1s_ref, b1_ref, w2_ref, b2_ref,
                            w3_ref, b3_ref, o_ref):
    """One batch tile of the full forward pass (batch on lanes).

    x_ref  : (TB, D)      input tile in its natural HBM layout (no host transpose)
    w1s_ref: (5*6D, D)    shared branch Linear^T replicated 5x, scales folded in
    b1_ref : (5*6D, 1)    shared branch bias replicated 5x
    w2_ref : (H, 5*6D)    MLP first Linear^T
    b2_ref : (H, 1)
    w3_ref : (H, O)       MLP output Linear
    b3_ref : (O, 1)
    o_ref  : (O, TB)      output tile (lane-dense)
    """
    x = x_ref[...]                                             # (TB, D)

    # One MXU pass produces all 5 branches stacked along sublanes:
    # rows [i*6D:(i+1)*6D] of z == ((s_i * x) @ W1 + b1)^T for branch i.
    # Contract on x's LAST axis (w1s @ x^T) so no transpose of x is needed.
    z = jax.lax.dot_general(w1s_ref[...], x, (((1,), (1,)), ((), ())),
                            precision=_HP,
                            preferred_element_type=jnp.float32) + b1_ref[...]
    h = jnp.where(z >= 0, z, LEAKY_SLOPE * z)                  # LeakyReLU(0.01)

    # concat(h_0..h_4) @ W2  ==  W2^T @ stacked(h): one 30D-deep contraction.
    a = jnp.dot(w2_ref[...], h, precision=_HP,
                preferred_element_type=jnp.float32) + b2_ref[...]
    h2 = jnp.tanh(a)

    if o_ref.shape[0] == 1:
        # (H,1) matmul is pure MXU overhead: VPU multiply + sublane (XLU) reduce.
        y = jnp.sum(w3_ref[...] * h2, axis=0, keepdims=True) + b3_ref[...]
    else:
        y = jax.lax.dot_general(w3_ref[...], h2, (((0,), (0,)), ((), ())),
                                precision=_HP,
                                preferred_element_type=jnp.float32) + b3_ref[...]
    o_ref[...] = y.astype(o_ref.dtype)


def prepare_kernel_params(flat_params):
    """Host-side, one-time reshaping of PyTorch-style params into kernel layout."""
    w1, b1, w2, b2, w3, b3 = flat_params
    D, d6 = w1.shape
    scales = jnp.asarray(SCALES, jnp.float32)
    # Fold the per-branch scale into 5 stacked copies of W1^T: (s*x)@W1 == x@(s*W1).
    w1s = (scales[:, None, None] * w1.T[None, :, :]).reshape(len(SCALES) * d6, D)
    b1r = jnp.tile(b1.reshape(d6, 1), (len(SCALES), 1))        # (5*6D, 1)
    w2t = w2.T                                                 # (H, 5*6D)
    b2c = b2.reshape(-1, 1)                                    # (H, 1)
    b3c = b3.reshape(-1, 1)                                    # (O, 1)
    return (w1s, b1r, w2t, b2c, w3, b3c)


def _num_tensorcores():
    """Best-effort TensorCore count per device (megacore chips -> 2)."""
    try:
        kind = jax.devices()[0].device_kind.lower()
    except Exception:
        return 1
    for tag in ("v7", "v4", "v5p"):
        if tag in kind:
            return 2
    return 1


def _choose_tile_b(B, num_tc, cap=_TILE_CAP):
    """Lane-dense (multiple of 128) batch tile, clamped to a VMEM-safe cap.

    Single-TC chips (v5e/v6e): one grid step when possible (grid is a serial
    loop; each extra step costs ~0.35 us of pipeline overhead).
    Dual-TC chips (v7x): aim for >=2 balanced steps so both cores get work.
    """
    rup = lambda v, m: ((v + m - 1) // m) * m
    B = max(int(B), 1)
    if num_tc <= 1:
        return min(rup(B, 128), cap)
    return min(rup(pl.cdiv(B, 2), 128), cap)


def potential_energy_cell(x, kparams, *, tile_b=None):
    """Pallas wrapper. Tiles over batch; handles ragged B via zero padding."""
    w1s, b1r, w2t, b2c, w3, b3c = kparams
    B, D = x.shape
    O = w3.shape[1]

    num_tc = _num_tensorcores()
    if tile_b is None:
        tile_b = _choose_tile_b(B, num_tc)
    tile_b = min(tile_b, _TILE_CAP)                 # unconditional clamp (no B fallback)

    n_steps = pl.cdiv(B, tile_b)
    if num_tc > 1 and n_steps > 1 and n_steps % 2 == 1:
        n_steps += 1                                # even step count -> both TCs balanced
    B_pad = n_steps * tile_b
    if B_pad != B:
        x = jnp.pad(x, ((0, B_pad - B), (0, 0)))    # garbage rows are sliced off below

    def full_spec(a):
        return pl.BlockSpec(a.shape, lambda i, _nd=a.ndim: (0,) * _nd)

    # Advisory cost so XLA can overlap this tiny kernel with neighbors.
    flops = B_pad * 2 * (w1s.shape[0] * D + w2t.shape[0] * w2t.shape[1] + w3.shape[0] * O)
    transcendentals = B_pad * w2t.shape[0]          # tanh
    bytes_accessed = (x.size + B_pad * O
                      + sum(int(a.size) for a in (w1s, b1r, w2t, b2c, w3, b3c))) * 4

    y_t = pl.pallas_call(
        potential_energy_kernel,
        out_shape=jax.ShapeDtypeStruct((O, B_pad), x.dtype),
        grid=(n_steps,),
        in_specs=[
            pl.BlockSpec((tile_b, D), lambda i: (i, 0)),   # x: natural layout, tiled on batch
            full_spec(w1s), full_spec(b1r),
            full_spec(w2t), full_spec(b2c),
            full_spec(w3), full_spec(b3c),
        ],
        out_specs=pl.BlockSpec((O, tile_b), lambda i: (0, i)),  # lane-dense output
        compiler_params=pltpu.CompilerParams(dimension_semantics=("parallel",)),
        cost_estimate=pl.CostEstimate(flops=int(flops),
                                      transcendentals=int(transcendentals),
                                      bytes_accessed=int(bytes_accessed)),
    )(x, w1s, b1r, w2t, b2c, w3, b3c)

    # Under jit this slice+transpose degenerates to a layout change.
    return y_t[:, :B].T                             # (B, O)


def init_params(key, input_dim, hidden_dim, output_dim):
    """Deterministic PyTorch-style uniform init (U(-1/sqrt(fan_in), 1/sqrt(fan_in)))."""
    d6 = input_dim * 6
    cat_dim = d6 * len(SCALES)
    ks = jax.random.split(key, 6)

    def uinit(k, shape, fan_in):
        bound = 1.0 / np.sqrt(fan_in)
        return jax.random.uniform(k, shape, jnp.float32, -bound, bound)

    w1 = uinit(ks[0], (input_dim, d6), input_dim)            # shared branch Linear
    b1 = uinit(ks[1], (d6,), input_dim)
    w2 = uinit(ks[2], (cat_dim, hidden_dim), cat_dim)        # MLP Linear 1
    b2 = uinit(ks[3], (hidden_dim,), cat_dim)
    w3 = uinit(ks[4], (hidden_dim, output_dim), hidden_dim)  # MLP Linear 2
    b3 = uinit(ks[5], (output_dim,), hidden_dim)
    return (w1, b1, w2, b2, w3, b3)


def reference_forward(x, flat_params):
    """Pure-JAX reference mirroring the PyTorch forward exactly (f32, HIGHEST)."""
    w1, b1, w2, b2, w3, b3 = flat_params
    outs = []
    for s in SCALES:
        h = jnp.dot(s * x, w1, precision=_HP) + b1
        outs.append(jnp.where(h >= 0, h, LEAKY_SLOPE * h))
    cat = jnp.concatenate(outs, axis=1)
    # TODO(synk): MLP class not shown in the snippet; assumed
    #             Linear(30D,H) -> Tanh -> Linear(H,O) for num_layers=1.
    h2 = jnp.tanh(jnp.dot(cat, w2, precision=_HP) + b2)
    return jnp.dot(h2, w3, precision=_HP) + b3


if __name__ == "__main__":
    input_dim, hidden_dim, output_dim = 4, 32, 1
    batch = 256

    key = jax.random.PRNGKey(0)
    kx, kp = jax.random.split(key)
    x = jax.random.normal(kx, (batch, input_dim), jnp.float32)
    flat_params = init_params(kp, input_dim, hidden_dim, output_dim)
    kparams = prepare_kernel_params(flat_params)

    fwd = jax.jit(lambda xx: potential_energy_cell(xx, kparams))
    y = jax.block_until_ready(fwd(x))

    y_ref = reference_forward(x, flat_params)
    np.testing.assert_allclose(np.asarray(y), np.asarray(y_ref), rtol=1e-5, atol=1e-5)

    print("KERNEL_OK")
</pallas_src>

<mosaic_0001>
module attributes {stable_mosaic.version = 11 : i64} {
  func.func @potential_energy_kernel(%arg0: i32, %arg1: memref<256x4xf32, #tpu.memory_space<vmem>>, %arg2: memref<120x4xf32, #tpu.memory_space<vmem>>, %arg3: memref<120x1xf32, #tpu.memory_space<vmem>>, %arg4: memref<32x120xf32, #tpu.memory_space<vmem>>, %arg5: memref<32x1xf32, #tpu.memory_space<vmem>>, %arg6: memref<32x1xf32, #tpu.memory_space<vmem>>, %arg7: memref<1x1xf32, #tpu.memory_space<vmem>>, %arg8: memref<1x256xf32, #tpu.memory_space<vmem>>) attributes {dimension_semantics = [#tpu.dimension_semantics<parallel>], iteration_bounds = array<i64: 1>, scalar_prefetch = 0 : i64, scratch_operands = 0 : i64, tpu.core_type = #tpu.core_type<tc>, window_params = [{transform_indices = @transform_0, window_bounds = array<i64: 256, 4>}, {pipeline_mode = #tpu.pipeline_mode<synchronous>, transform_indices = @transform_1, window_bounds = array<i64: 120, 4>}, {pipeline_mode = #tpu.pipeline_mode<synchronous>, transform_indices = @transform_2, window_bounds = array<i64: 120, 1>}, {pipeline_mode = #tpu.pipeline_mode<synchronous>, transform_indices = @transform_3, window_bounds = array<i64: 32, 120>}, {pipeline_mode = #tpu.pipeline_mode<synchronous>, transform_indices = @transform_4, window_bounds = array<i64: 32, 1>}, {pipeline_mode = #tpu.pipeline_mode<synchronous>, transform_indices = @transform_5, window_bounds = array<i64: 32, 1>}, {pipeline_mode = #tpu.pipeline_mode<synchronous>, transform_indices = @transform_6, window_bounds = array<i64: 1, 1>}, {transform_indices = @transform_7, window_bounds = array<i64: 1, 256>}]} {
    %c0 = arith.constant 0 : index
    %c0_0 = arith.constant 0 : index
    %0 = vector.load %arg1[%c0, %c0_0] : memref<256x4xf32, #tpu.memory_space<vmem>>, vector<256x4xf32>
    %c0_1 = arith.constant 0 : index
    %c0_2 = arith.constant 0 : index
    %1 = vector.load %arg2[%c0_1, %c0_2] : memref<120x4xf32, #tpu.memory_space<vmem>>, vector<120x4xf32>
    %cst = arith.constant dense<0.000000e+00> : vector<120x256xf32>
    %2 = tpu.matmul %1, %0, %cst {dimension_numbers = #tpu.dot_dimension_numbers<[1], [1], [0], [0], [0, 0, 1, 0], [], []>, precision = #tpu.contract_precision<fp32>} : vector<120x4xf32>, vector<256x4xf32>, vector<120x256xf32> -> vector<120x256xf32>
    %c0_3 = arith.constant 0 : index
    %c0_4 = arith.constant 0 : index
    %3 = vector.load %arg3[%c0_3, %c0_4] : memref<120x1xf32, #tpu.memory_space<vmem>>, vector<120x1xf32>
    %4 = vector.broadcast %3 : vector<120x1xf32> to vector<120x256xf32>
    %5 = arith.addf %2, %4 : vector<120x256xf32>
    %cst_5 = arith.constant 0.000000e+00 : f32
    %6 = vector.broadcast %cst_5 : f32 to vector<120x256xf32>
    %7 = arith.cmpf oge, %5, %6 : vector<120x256xf32>
    %cst_6 = arith.constant 0.00999999977 : f32
    %8 = vector.broadcast %cst_6 : f32 to vector<120x256xf32>
    %9 = arith.mulf %8, %5 : vector<120x256xf32>
    %10 = arith.select %7, %5, %9 : vector<120x256xi1>, vector<120x256xf32>
    %c0_7 = arith.constant 0 : index
    %c0_8 = arith.constant 0 : index
    %11 = vector.load %arg4[%c0_7, %c0_8] : memref<32x120xf32, #tpu.memory_space<vmem>>, vector<32x120xf32>
    %cst_9 = arith.constant dense<0.000000e+00> : vector<32x256xf32>
    %12 = tpu.matmul %11, %10, %cst_9 {dimension_numbers = #tpu.dot_dimension_numbers<[1], [0], [0], [1], [0, 0, 1, 1], [], []>, precision = #tpu.contract_precision<fp32>} : vector<32x120xf32>, vector<120x256xf32>, vector<32x256xf32> -> vector<32x256xf32>
    %c0_10 = arith.constant 0 : index
    %c0_11 = arith.constant 0 : index
    %13 = vector.load %arg5[%c0_10, %c0_11] : memref<32x1xf32, #tpu.memory_space<vmem>>, vector<32x1xf32>
    %14 = vector.broadcast %13 : vector<32x1xf32> to vector<32x256xf32>
    %15 = arith.addf %12, %14 : vector<32x256xf32>
    %16 = math.tanh %15 : vector<32x256xf32>
    %c0_12 = arith.constant 0 : index
    %c0_13 = arith.constant 0 : index
    %17 = vector.load %arg6[%c0_12, %c0_13] : memref<32x1xf32, #tpu.memory_space<vmem>>, vector<32x1xf32>
    %18 = vector.broadcast %17 : vector<32x1xf32> to vector<32x256xf32>
    %19 = arith.mulf %18, %16 : vector<32x256xf32>
    %cst_14 = arith.constant dense<0.000000e+00> : vector<256xf32>
    %20 = vector.multi_reduction <add>, %19, %cst_14 [0] : vector<32x256xf32> to vector<256xf32>
    %21 = vector.shape_cast %20 : vector<256xf32> to vector<1x256xf32>
    %c0_15 = arith.constant 0 : index
    %c0_16 = arith.constant 0 : index
    %22 = vector.load %arg7[%c0_15, %c0_16] : memref<1x1xf32, #tpu.memory_space<vmem>>, vector<1x1xf32>
    %23 = vector.broadcast %22 : vector<1x1xf32> to vector<1x256xf32>
    %24 = arith.addf %21, %23 : vector<1x256xf32>
    %c0_17 = arith.constant 0 : index
    %c0_18 = arith.constant 0 : index
    %25 = vector.load %arg8[%c0_17, %c0_18] : memref<1x256xf32, #tpu.memory_space<vmem>>, vector<1x256xf32>
    tpu.vector_store %arg8[%c0_17, %c0_18], %24 {strides = array<i32>} : memref<1x256xf32, #tpu.memory_space<vmem>>, vector<1x256xf32>,
    return
  }
  func.func @transform_0(%arg0: i32) -> (i32, i32) {
    %c0_i32 = arith.constant 0 : i32
    %c0_i32_0 = arith.constant 0 : i32
    return %arg0, %c0_i32 : i32, i32
  }
  func.func @transform_1(%arg0: i32) -> (i32, i32) {
    %c0_i32 = arith.constant 0 : i32
    %c0_i32_0 = arith.constant 0 : i32
    %c0_i32_1 = arith.constant 0 : i32
    return %c0_i32, %c0_i32_0 : i32, i32
  }
  func.func @transform_2(%arg0: i32) -> (i32, i32) {
    %c0_i32 = arith.constant 0 : i32
    %c0_i32_0 = arith.constant 0 : i32
    %c0_i32_1 = arith.constant 0 : i32
    return %c0_i32, %c0_i32_0 : i32, i32
  }
  func.func @transform_3(%arg0: i32) -> (i32, i32) {
    %c0_i32 = arith.constant 0 : i32
    %c0_i32_0 = arith.constant 0 : i32
    %c0_i32_1 = arith.constant 0 : i32
    return %c0_i32, %c0_i32_0 : i32, i32
  }
  func.func @transform_4(%arg0: i32) -> (i32, i32) {
    %c0_i32 = arith.constant 0 : i32
    %c0_i32_0 = arith.constant 0 : i32
    %c0_i32_1 = arith.constant 0 : i32
    return %c0_i32, %c0_i32_0 : i32, i32
  }
  func.func @transform_5(%arg0: i32) -> (i32, i32) {
    %c0_i32 = arith.constant 0 : i32
    %c0_i32_0 = arith.constant 0 : i32
    %c0_i32_1 = arith.constant 0 : i32
    return %c0_i32, %c0_i32_0 : i32, i32
  }
  func.func @transform_6(%arg0: i32) -> (i32, i32) {
    %c0_i32 = arith.constant 0 : i32
    %c0_i32_0 = arith.constant 0 : i32
    %c0_i32_1 = arith.constant 0 : i32
    return %c0_i32, %c0_i32_0 : i32, i32
  }
  func.func @transform_7(%arg0: i32) -> (i32, i32) {
    %c0_i32 = arith.constant 0 : i32
    %c0_i32_0 = arith.constant 0 : i32
    return %c0_i32, %arg0 : i32, i32
  }
}

</mosaic_0001>

<llo_original>
// kernel: _lambda_.1
$region0: #{_lambda_.1}
  #allocation0 [shape = 'u32[]', space=smem, size = 0x4, offset = 0x4, fixed_abs, tag = 'smem constant byte address 0x4 - core index']
  #allocation1 [shape = 'u32[144,128]{1,0:T(1,128)}', space=vmem, size = 0x12000, scoped, tag = 'internal scratch']
  #allocation2 [shape = 'f32[1,1]{1,0:T(1,128)S(1)}', space=vmem, size = 0x200, scoped, tag = 'scoped memory for _lambda_.1']
  %s0 = inlined_call_operand.vmem [shape: f32[256,4], index: 0, kind: input, shape index: {}]
  %s1 = inlined_call_operand.vmem [shape: f32[120,4], index: 1, kind: input, shape index: {}]
  %s2 = inlined_call_operand.vmem [shape: f32[120,1], index: 2, kind: input, shape index: {}]
  %s3 = inlined_call_operand.hbm [shape: f32[32,120], index: 3, kind: input, shape index: {}]
  %s4 = inlined_call_operand.hbm [shape: f32[32,1], index: 4, kind: input, shape index: {}]
  %s5 = inlined_call_operand.vmem [shape: f32[32,1], index: 5, kind: input, shape index: {}]
  %s6 = inlined_call_operand.<no memory space> [shape: f32[1,1], index: 6, kind: input, shape index: {}]
  %s7 = inlined_call_operand.hbm [shape: f32[1,256], index: 7, kind: output, shape index: {}]
  %s8 = sld [smem:[#allocation0]]
  $region46: #{_lambda_.1} parent=0
    _
  %s10 = ssub.s32 1, %s8
  %s11 = scalar_select 0, %s10, %s8
  %v12 = vstv %s6
  %13 = vst [vmem:[#allocation2] sm:$0x1] %v12
  $region1: #{_lambda_.1} parent=0
    #allocation3 [shape = 'u8[16384]{0}', space=vmem, size = 0x4000, scoped, tag = 'input window, operand 3, single buffered']
    #allocation4 [shape = 's32[1]{0}', space=sflag, size = 0x4, scoped, tag = 'scoped memory for _lambda_.1']
    #allocation5 [shape = 's32[1]{0}', space=sflag, size = 0x4, scoped, tag = 'scoped memory for _lambda_.1']
    #allocation6 [shape = 'u8[16384]{0}', space=vmem, size = 0x4000, scoped, tag = 'input window, operand 4, single buffered']
    #allocation7 [shape = 's32[1]{0}', space=sflag, size = 0x4, scoped, tag = 'scoped memory for _lambda_.1']
    #allocation8 [shape = 'u8[1024]{0}', space=vmem, size = 0x400, scoped, tag = 'output window, operand 0, single buffered']
    %14 = vsyncpa [#allocation4], 0
    %15 = vsyncpa [#allocation7], 0
    %16 = vsyncpa [#allocation5], 0
    // Predicated region
    $region2: #{_lambda_.1} parent=1 // pred_check
      _
    $region3: #{_lambda_.1} parent=1 // pred_check_branch
      %18 = sbr.rel (0) target = $region5
    $region4: #{_lambda_.1} parent=1 // pred_region
      _
    $region5: #{_lambda_.1} parent=1 // pred_fallthru
      _
    // Predicated region
    $region6: #{_lambda_.1} parent=1 // pred_check
      _
    $region7: #{_lambda_.1} parent=1 // pred_check_branch
      %20 = sbr.rel (0) target = $region9
    $region8: #{_lambda_.1} parent=1 // pred_region
      _
    $region9: #{_lambda_.1} parent=1 // pred_fallthru
      _
    // Predicated region
    $region10: #{_lambda_.1} parent=1 // pred_check
      _
    $region11: #{_lambda_.1} parent=1 // pred_check_branch
      %22 = sbr.rel (0) target = $region13
    $region12: #{_lambda_.1} parent=1 // pred_region
      _
    $region13: #{_lambda_.1} parent=1 // pred_fallthru
      _
    // Predicated region
    $region14: #{_lambda_.1} parent=1 // pred_check
      _
    $region15: #{_lambda_.1} parent=1 // pred_check_branch
      %24 = sbr.rel (0) target = $region17
    $region16: #{_lambda_.1} parent=1 // pred_region
      %s26 = ssub.s32 512, 512
      %27 = vsyncadd [#allocation4], %s26
      %s28 = sshll.u32 [#allocation3], 4
      %s29 = int_to_ptr.vmem [resolvable:$true] %s28
      %34 = dma.hbm_to_vmem [thread:$0]  %s3, 512, %s29, [#allocation4], 128, 128, 8
    $region17: #{_lambda_.1} parent=1 // pred_fallthru
      _
    // Predicated region
    $region18: #{_lambda_.1} parent=1 // pred_check
      _
    $region19: #{_lambda_.1} parent=1 // pred_check_branch
      %36 = sbr.rel (0) target = $region21
    $region20: #{_lambda_.1} parent=1 // pred_region
      %s38 = ssub.s32 512, 512
      %39 = vsyncadd [#allocation7], %s38
      %s40 = sshll.u32 [#allocation6], 4
      %s41 = int_to_ptr.vmem [resolvable:$true] %s40
      %46 = dma.hbm_to_vmem [thread:$0]  %s4, 512, %s41, [#allocation7], 128, 128, 8
    $region21: #{_lambda_.1} parent=1 // pred_fallthru
      _
    // Predicated region
    $region22: #{_lambda_.1} parent=1 // pred_check
      _
    $region23: #{_lambda_.1} parent=1 // pred_check_branch
      %48 = sbr.rel (0) target = $region25
    $region24: #{_lambda_.1} parent=1 // pred_region
      _
    $region25: #{_lambda_.1} parent=1 // pred_fallthru
      _
    // Predicated region
    $region26: #{_lambda_.1} parent=1 // pred_check
      _
    $region27: #{_lambda_.1} parent=1 // pred_check_branch
      %50 = sbr.rel (0) target = $region29
    $region28: #{_lambda_.1} parent=1 // pred_region
      _
    $region29: #{_lambda_.1} parent=1 // pred_fallthru
      _
    // Predicated region
    $region30: #{_lambda_.1} parent=1 // pred_check
      _
    $region31: #{_lambda_.1} parent=1 // pred_check_branch
      %52 = sbr.rel (0) target = $region33
    $region32: #{_lambda_.1} parent=1 // pred_region
      %53 = dma.done [#allocation4], 512
    $region33: #{_lambda_.1} parent=1 // pred_fallthru
      _
    // Predicated region
    $region34: #{_lambda_.1} parent=1 // pred_check
      _
    $region35: #{_lambda_.1} parent=1 // pred_check_branch
      %55 = sbr.rel (0) target = $region37
    $region36: #{_lambda_.1} parent=1 // pred_region
      %56 = dma.done [#allocation7], 512
    $region37: #{_lambda_.1} parent=1 // pred_fallthru
      _
    %v57 = vld [vmem:[%s0] sm:$0xff]
    %v58 = vld [vmem:[%s0 + $0x8] sm:$0xff]
    %v59 = vld [vmem:[%s0 + $0x10] sm:$0xff]
    %v60 = vld [vmem:[%s0 + $0x18] sm:$0xff]
    %v61 = vld [vmem:[%s0 + $0x20] sm:$0xff]
    %v62 = vld [vmem:[%s0 + $0x28] sm:$0xff]
    %v63 = vld [vmem:[%s0 + $0x30] sm:$0xff]
    %v64 = vld [vmem:[%s0 + $0x38] sm:$0xff]
    %v65 = vld [vmem:[%s0 + $0x40] sm:$0xff]
    %v66 = vld [vmem:[%s0 + $0x48] sm:$0xff]
    %v67 = vld [vmem:[%s0 + $0x50] sm:$0xff]
    %v68 = vld [vmem:[%s0 + $0x58] sm:$0xff]
    %v69 = vld [vmem:[%s0 + $0x60] sm:$0xff]
    %v70 = vld [vmem:[%s0 + $0x68] sm:$0xff]
    %v71 = vld [vmem:[%s0 + $0x70] sm:$0xff]
    %v72 = vld [vmem:[%s0 + $0x78] sm:$0xff]
    %v73 = vld [vmem:[%s0 + $0x80] sm:$0xff]
    %v74 = vld [vmem:[%s0 + $0x88] sm:$0xff]
    %v75 = vld [vmem:[%s0 + $0x90] sm:$0xff]
    %v76 = vld [vmem:[%s0 + $0x98] sm:$0xff]
    %v77 = vld [vmem:[%s0 + $0xa0] sm:$0xff]
    %v78 = vld [vmem:[%s0 + $0xa8] sm:$0xff]
    %v79 = vld [vmem:[%s0 + $0xb0] sm:$0xff]
    %v80 = vld [vmem:[%s0 + $0xb8] sm:$0xff]
    %v81 = vld [vmem:[%s0 + $0xc0] sm:$0xff]
    %v82 = vld [vmem:[%s0 + $0xc8] sm:$0xff]
    %v83 = vld [vmem:[%s0 + $0xd0] sm:$0xff]
    %v84 = vld [vmem:[%s0 + $0xd8] sm:$0xff]
    %v85 = vld [vmem:[%s0 + $0xe0] sm:$0xff]
    %v86 = vld [vmem:[%s0 + $0xe8] sm:$0xff]
    %v87 = vld [vmem:[%s0 + $0xf0] sm:$0xff]
    %v88 = vld [vmem:[%s0 + $0xf8] sm:$0xff]
    %v89 = vld [vmem:[%s1] sm:$0xff]
    %v90 = vld [vmem:[%s1 + $0x8] sm:$0xff]
    %v91 = vld [vmem:[%s1 + $0x10] sm:$0xff]
    %v92 = vld [vmem:[%s1 + $0x18] sm:$0xff]
    %v93 = vld [vmem:[%s1 + $0x20] sm:$0xff]
    %v94 = vld [vmem:[%s1 + $0x28] sm:$0xff]
    %v95 = vld [vmem:[%s1 + $0x30] sm:$0xff]
    %v96 = vld [vmem:[%s1 + $0x38] sm:$0xff]
    %v97 = vld [vmem:[%s1 + $0x40] sm:$0xff]
    %v98 = vld [vmem:[%s1 + $0x48] sm:$0xff]
    %v99 = vld [vmem:[%s1 + $0x50] sm:$0xff]
    %v100 = vld [vmem:[%s1 + $0x58] sm:$0xff]
    %v101 = vld [vmem:[%s1 + $0x60] sm:$0xff]
    %v102 = vld [vmem:[%s1 + $0x68] sm:$0xff]
    %v103 = vld [vmem:[%s1 + $0x70] sm:$0xff]
    %v104 = vld [vmem:[%s2] sm:$0xff]
    %v105 = vld [vmem:[%s2 + $0x8] sm:$0xff]
    %v106 = vld [vmem:[%s2 + $0x10] sm:$0xff]
    %v107 = vld [vmem:[%s2 + $0x18] sm:$0xff]
    %v108 = vld [vmem:[%s2 + $0x20] sm:$0xff]
    %v109 = vld [vmem:[%s2 + $0x28] sm:$0xff]
    %v110 = vld [vmem:[%s2 + $0x30] sm:$0xff]
    %v111 = vld [vmem:[%s2 + $0x38] sm:$0xff]
    %v112 = vld [vmem:[%s2 + $0x40] sm:$0xff]
    %v113 = vld [vmem:[%s2 + $0x48] sm:$0xff]
    %v114 = vld [vmem:[%s2 + $0x50] sm:$0xff]
    %v115 = vld [vmem:[%s2 + $0x58] sm:$0xff]
    %v116 = vld [vmem:[%s2 + $0x60] sm:$0xff]
    %v117 = vld [vmem:[%s2 + $0x68] sm:$0xff]
    %v118 = vld [vmem:[%s2 + $0x70] sm:$0xff]
    %120 = vset.pattern.permute.xlu0 0
    %121 = vperm.xlu0 %120, %v104
    %v122 = vpop.permute.xlu0 %121
    %125 = vset.pattern.permute.xlu0 0
    %126 = vperm.xlu0 %125, %v105
    %v127 = vpop.permute.xlu0 %126
    %130 = vset.pattern.permute.xlu0 0
    %131 = vperm.xlu0 %130, %v106
    %v132 = vpop.permute.xlu0 %131
    %135 = vset.pattern.permute.xlu0 0
    %136 = vperm.xlu0 %135, %v107
    %v137 = vpop.permute.xlu0 %136
    %140 = vset.pattern.permute.xlu0 0
    %141 = vperm.xlu0 %140, %v108
    %v142 = vpop.permute.xlu0 %141
    %145 = vset.pattern.permute.xlu0 0
    %146 = vperm.xlu0 %145, %v109
    %v147 = vpop.permute.xlu0 %146
    %150 = vset.pattern.permute.xlu0 0
    %151 = vperm.xlu0 %150, %v110
    %v152 = vpop.permute.xlu0 %151
    %155 = vset.pattern.permute.xlu0 0
    %156 = vperm.xlu0 %155, %v111
    %v157 = vpop.permute.xlu0 %156
    %160 = vset.pattern.permute.xlu0 0
    %161 = vperm.xlu0 %160, %v112
    %v162 = vpop.permute.xlu0 %161
    %165 = vset.pattern.permute.xlu0 0
    %166 = vperm.xlu0 %165, %v113
    %v167 = vpop.permute.xlu0 %166
    %170 = vset.pattern.permute.xlu0 0
    %171 = vperm.xlu0 %170, %v114
    %v172 = vpop.permute.xlu0 %171
    %175 = vset.pattern.permute.xlu0 0
    %176 = vperm.xlu0 %175, %v115
    %v177 = vpop.permute.xlu0 %176
    %180 = vset.pattern.permute.xlu0 0
    %181 = vperm.xlu0 %180, %v116
    %v182 = vpop.permute.xlu0 %181
    %185 = vset.pattern.permute.xlu0 0
    %186 = vperm.xlu0 %185, %v117
    %v187 = vpop.permute.xlu0 %186
    %190 = vset.pattern.permute.xlu0 0
    %191 = vperm.xlu0 %190, %v118
    %v192 = vpop.permute.xlu0 %191
    %vm194 = vcmask 31744
    %v196 = vsel %vm194, %v89, 0
    %v199 = vsel %vm194, %v90, 0
    %v202 = vsel %vm194, %v91, 0
    %v205 = vsel %vm194, %v92, 0
    %v208 = vsel %vm194, %v93, 0
    %v211 = vsel %vm194, %v94, 0
    %v214 = vsel %vm194, %v95, 0
    %v217 = vsel %vm194, %v96, 0
    %v220 = vsel %vm194, %v97, 0
    %v223 = vsel %vm194, %v98, 0
    %v226 = vsel %vm194, %v99, 0
    %v229 = vsel %vm194, %v100, 0
    %v232 = vsel %vm194, %v101, 0
    %v235 = vsel %vm194, %v102, 0
    %v238 = vsel %vm194, %v103, 0
    %v241 = vsel %vm194, %v57, 0
    %v244 = vsel %vm194, %v58, 0
    %v247 = vsel %vm194, %v59, 0
    %v250 = vsel %vm194, %v60, 0
    %v253 = vsel %vm194, %v61, 0
    %v256 = vsel %vm194, %v62, 0
    %v259 = vsel %vm194, %v63, 0
    %v262 = vsel %vm194, %v64, 0
    %v265 = vsel %vm194, %v65, 0
    %v268 = vsel %vm194, %v66, 0
    %v271 = vsel %vm194, %v67, 0
    %v274 = vsel %vm194, %v68, 0
    %v277 = vsel %vm194, %v69, 0
    %v280 = vsel %vm194, %v70, 0
    %v283 = vsel %vm194, %v71, 0
    %v286 = vsel %vm194, %v72, 0
    %v289 = vsel %vm194, %v73, 0
    %v292 = vsel %vm194, %v74, 0
    %v295 = vsel %vm194, %v75, 0
    %v298 = vsel %vm194, %v76, 0
    %v301 = vsel %vm194, %v77, 0
    %v304 = vsel %vm194, %v78, 0
    %v307 = vsel %vm194, %v79, 0
    %v310 = vsel %vm194, %v80, 0
    %v313 = vsel %vm194, %v81, 0
    %v316 = vsel %vm194, %v82, 0
    %v319 = vsel %vm194, %v83, 0
    %v322 = vsel %vm194, %v84, 0
    %v325 = vsel %vm194, %v85, 0
    %v328 = vsel %vm194, %v86, 0
    %v331 = vsel %vm194, %v87, 0
    %v334 = vsel %vm194, %v88, 0
    %336 = vmatprep.subr.mxu0 0.0
    %v337 = vand.u32 %v241, 4294901760
    %338 = vmatpush1.xpose.msra.mxu0 %v337
    %339 = vmatprep.subr.mxu0 0.0
    %v340 = vand.u32 %v244, 4294901760
    %341 = vmatpush1.xpose.msra.mxu0 %v340
    %342 = vmatprep.subr.mxu0 0.0
    %v343 = vand.u32 %v247, 4294901760
    %344 = vmatpush1.xpose.msra.mxu0 %v343
    %345 = vmatprep.subr.mxu0 0.0
    %v346 = vand.u32 %v250, 4294901760
    %347 = vmatpush1.xpose.msra.mxu0 %v346
    %348 = vmatprep.subr.mxu0 0.0
    %v349 = vand.u32 %v253, 4294901760
    %350 = vmatpush1.xpose.msra.mxu0 %v349
    %351 = vmatprep.subr.mxu0 0.0
    %v352 = vand.u32 %v256, 4294901760
    %353 = vmatpush1.xpose.msra.mxu0 %v352
    %354 = vmatprep.subr.mxu0 0.0
    %v355 = vand.u32 %v259, 4294901760
    %356 = vmatpush1.xpose.msra.mxu0 %v355
    %357 = vmatprep.subr.mxu0 0.0
    %v358 = vand.u32 %v262, 4294901760
    %359 = vmatpush1.xpose.msra.mxu0 %v358
    %360 = vmatprep.subr.mxu0 0.0
    %v361 = vand.u32 %v265, 4294901760
    %362 = vmatpush1.xpose.msra.mxu0 %v361
    %363 = vmatprep.subr.mxu0 0.0
    %v364 = vand.u32 %v268, 4294901760
    %365 = vmatpush1.xpose.msra.mxu0 %v364
    %366 = vmatprep.subr.mxu0 0.0
    %v367 = vand.u32 %v271, 4294901760
    %368 = vmatpush1.xpose.msra.mxu0 %v367
    %369 = vmatprep.subr.mxu0 0.0
    %v370 = vand.u32 %v274, 4294901760
    %371 = vmatpush1.xpose.msra.mxu0 %v370
    %372 = vmatprep.subr.mxu0 0.0
    %v373 = vand.u32 %v277, 4294901760
    %374 = vmatpush1.xpose.msra.mxu0 %v373
    %375 = vmatprep.subr.mxu0 0.0
    %v376 = vand.u32 %v280, 4294901760
    %377 = vmatpush1.xpose.msra.mxu0 %v376
    %378 = vmatprep.subr.mxu0 0.0
    %v379 = vand.u32 %v283, 4294901760
    %380 = vmatpush1.xpose.msra.mxu0 %v379
    %381 = vmatprep.subr.mxu0 0.0
    %v382 = vand.u32 %v286, 4294901760
    %383 = vmatpush1.xpose.msra.mxu0 %v382
    %384 = vmatprep.subr.mxu0 0.0
    %v385 = vand.u32 %v289, 4294901760
    %386 = vmatpush1.xpose.msra.mxu0 %v385
    %387 = vmatprep.subr.mxu0 0.0
    %v388 = vand.u32 %v292, 4294901760
    %389 = vmatpush1.xpose.msra.mxu0 %v388
    %390 = vmatprep.subr.mxu0 0.0
    %v391 = vand.u32 %v295, 4294901760
    %392 = vmatpush1.xpose.msra.mxu0 %v391
    %393 = vmatprep.subr.mxu0 0.0
    %v394 = vand.u32 %v298, 4294901760
    %395 = vmatpush1.xpose.msra.mxu0 %v394
    %396 = vmatprep.subr.mxu0 0.0
    %v397 = vand.u32 %v301, 4294901760
    %398 = vmatpush1.xpose.msra.mxu0 %v397
    %399 = vmatprep.subr.mxu0 0.0
    %v400 = vand.u32 %v304, 4294901760
    %401 = vmatpush1.xpose.msra.mxu0 %v400
    %402 = vmatprep.subr.mxu0 0.0
    %v403 = vand.u32 %v307, 4294901760
    %404 = vmatpush1.xpose.msra.mxu0 %v403
    %405 = vmatprep.subr.mxu0 0.0
    %v406 = vand.u32 %v310, 4294901760
    %407 = vmatpush1.xpose.msra.mxu0 %v406
    %408 = vmatprep.subr.mxu0 0.0
    %v409 = vand.u32 %v313, 4294901760
    %410 = vmatpush1.xpose.msra.mxu0 %v409
    %411 = vmatprep.subr.mxu0 0.0
    %v412 = vand.u32 %v316, 4294901760
    %413 = vmatpush1.xpose.msra.mxu0 %v412
    %414 = vmatprep.subr.mxu0 0.0
    %v415 = vand.u32 %v319, 4294901760
    %416 = vmatpush1.xpose.msra.mxu0 %v415
    %417 = vmatprep.subr.mxu0 0.0
    %v418 = vand.u32 %v322, 4294901760
    %419 = vmatpush1.xpose.msra.mxu0 %v418
    %420 = vmatprep.subr.mxu0 0.0
    %v421 = vand.u32 %v325, 4294901760
    %422 = vmatpush1.xpose.msra.mxu0 %v421
    %423 = vmatprep.subr.mxu0 0.0
    %v424 = vand.u32 %v328, 4294901760
    %425 = vmatpush1.xpose.msra.mxu0 %v424
    %426 = vmatprep.subr.mxu0 0.0
    %v427 = vand.u32 %v331, 4294901760
    %428 = vmatpush1.xpose.msra.mxu0 %v427
    %429 = vmatprep.subr.mxu0 0.0
    %v430 = vand.u32 %v334, 4294901760
    %431 = vmatpush1.xpose.msra.mxu0 %v430
    %432 = vmatprep.mubr.f32.mxu0 0.0
    %v433 = vand.u32 %v196, 4294901760
    %v434 = vsub.f32 %v196, %v433
    %v435 = vand.u32 %v434, 4294901760
    %v436 = vsub.f32 %v434, %v435
    %v437 = vand.u32 %v436, 4294901760
    %438 = vmatmul.mubr.f32.gmra.mrb[0].mxu0 %v437
    %v439 = vpop.f32.mrb[0].mxu0
    %v440 = vadd.f32 %v122, %v439
    %v441 = vpop.f32.mrb[0].mxu0
    %v442 = vadd.f32 %v122, %v441
    %443 = vmatprep.mubr.f32.mxu0 0.0
    %v444 = vand.u32 %v199, 4294901760
    %v445 = vsub.f32 %v199, %v444
    %v446 = vand.u32 %v445, 4294901760
    %v447 = vsub.f32 %v445, %v446
    %v448 = vand.u32 %v447, 4294901760
    %449 = vmatmul.mubr.f32.gmra.mrb[0].mxu0 %v448
    %v450 = vpop.f32.mrb[0].mxu0
    %v451 = vadd.f32 %v127, %v450
    %v452 = vpop.f32.mrb[0].mxu0
    %v453 = vadd.f32 %v127, %v452
    %454 = vmatprep.mubr.f32.mxu0 0.0
    %v455 = vand.u32 %v202, 4294901760
    %v456 = vsub.f32 %v202, %v455
    %v457 = vand.u32 %v456, 4294901760
    %v458 = vsub.f32 %v456, %v457
    %v459 = vand.u32 %v458, 4294901760
    %460 = vmatmul.mubr.f32.gmra.mrb[0].mxu0 %v459
    %v461 = vpop.f32.mrb[0].mxu0
    %v462 = vadd.f32 %v132, %v461
    %v463 = vpop.f32.mrb[0].mxu0
    %v464 = vadd.f32 %v132, %v463
    %465 = vmatprep.mubr.f32.mxu0 0.0
    %v466 = vand.u32 %v205, 4294901760
    %v467 = vsub.f32 %v205, %v466
    %v468 = vand.u32 %v467, 4294901760
    %v469 = vsub.f32 %v467, %v468
    %v470 = vand.u32 %v469, 4294901760
    %471 = vmatmul.mubr.f32.gmra.mrb[0].mxu0 %v470
    %v472 = vpop.f32.mrb[0].mxu0
    %v473 = vadd.f32 %v137, %v472
    %v474 = vpop.f32.mrb[0].mxu0
    %v475 = vadd.f32 %v137, %v474
    %476 = vmatprep.mubr.f32.mxu0 0.0
    %v477 = vand.u32 %v208, 4294901760
    %v478 = vsub.f32 %v208, %v477
    %v479 = vand.u32 %v478, 4294901760
    %v480 = vsub.f32 %v478, %v479
    %v481 = vand.u32 %v480, 4294901760
    %482 = vmatmul.mubr.f32.gmra.mrb[0].mxu0 %v481
    %v483 = vpop.f32.mrb[0].mxu0
    %v484 = vadd.f32 %v142, %v483
    %v485 = vpop.f32.mrb[0].mxu0
    %v486 = vadd.f32 %v142, %v485
    %487 = vmatprep.mubr.f32.mxu0 0.0
    %v488 = vand.u32 %v211, 4294901760
    %v489 = vsub.f32 %v211, %v488
    %v490 = vand.u32 %v489, 4294901760
    %v491 = vsub.f32 %v489, %v490
    %v492 = vand.u32 %v491, 4294901760
    %493 = vmatmul.mubr.f32.gmra.mrb[0].mxu0 %v492
    %v494 = vpop.f32.mrb[0].mxu0
    %v495 = vadd.f32 %v147, %v494
    %v496 = vpop.f32.mrb[0].mxu0
    %v497 = vadd.f32 %v147, %v496
    %498 = vmatprep.mubr.f32.mxu0 0.0
    %v499 = vand.u32 %v214, 4294901760
    %v500 = vsub.f32 %v214, %v499
    %v501 = vand.u32 %v500, 4294901760
    %v502 = vsub.f32 %v500, %v501
    %v503 = vand.u32 %v502, 4294901760
    %504 = vmatmul.mubr.f32.gmra.mrb[0].mxu0 %v503
    %v505 = vpop.f32.mrb[0].mxu0
    %v506 = vadd.f32 %v152, %v505
    %v507 = vpop.f32.mrb[0].mxu0
    %v508 = vadd.f32 %v152, %v507
    %509 = vmatprep.mubr.f32.mxu0 0.0
    %v510 = vand.u32 %v217, 4294901760
    %v511 = vsub.f32 %v217, %v510
    %v512 = vand.u32 %v511, 4294901760
    %v513 = vsub.f32 %v511, %v512
    %v514 = vand.u32 %v513, 4294901760
    %515 = vmatmul.mubr.f32.gmra.mrb[0].mxu0 %v514
    %v516 = vpop.f32.mrb[0].mxu0
    %v517 = vadd.f32 %v157, %v516
    %v518 = vpop.f32.mrb[0].mxu0
    %v519 = vadd.f32 %v157, %v518
    %520 = vmatprep.mubr.f32.mxu0 0.0
    %v521 = vand.u32 %v220, 4294901760
    %v522 = vsub.f32 %v220, %v521
    %v523 = vand.u32 %v522, 4294901760
    %v524 = vsub.f32 %v522, %v523
    %v525 = vand.u32 %v524, 4294901760
    %526 = vmatmul.mubr.f32.gmra.mrb[0].mxu0 %v525
    %v527 = vpop.f32.mrb[0].mxu0
    %v528 = vadd.f32 %v162, %v527
    %v529 = vpop.f32.mrb[0].mxu0
    %v530 = vadd.f32 %v162, %v529
    %531 = vmatprep.mubr.f32.mxu0 0.0
    %v532 = vand.u32 %v223, 4294901760
    %v533 = vsub.f32 %v223, %v532
    %v534 = vand.u32 %v533, 4294901760
    %v535 = vsub.f32 %v533, %v534
    %v536 = vand.u32 %v535, 4294901760
    %537 = vmatmul.mubr.f32.gmra.mrb[0].mxu0 %v536
    %v538 = vpop.f32.mrb[0].mxu0
    %v539 = vadd.f32 %v167, %v538
    %v540 = vpop.f32.mrb[0].mxu0
    %v541 = vadd.f32 %v167, %v540
    %542 = vmatprep.mubr.f32.mxu0 0.0
    %v543 = vand.u32 %v226, 4294901760
    %v544 = vsub.f32 %v226, %v543
    %v545 = vand.u32 %v544, 4294901760
    %v546 = vsub.f32 %v544, %v545
    %v547 = vand.u32 %v546, 4294901760
    %548 = vmatmul.mubr.f32.gmra.mrb[0].mxu0 %v547
    %v549 = vpop.f32.mrb[0].mxu0
    %v550 = vadd.f32 %v172, %v549
    %v551 = vpop.f32.mrb[0].mxu0
    %v552 = vadd.f32 %v172, %v551
    %553 = vmatprep.mubr.f32.mxu0 0.0
    %v554 = vand.u32 %v229, 4294901760
    %v555 = vsub.f32 %v229, %v554
    %v556 = vand.u32 %v555, 4294901760
    %v557 = vsub.f32 %v555, %v556
    %v558 = vand.u32 %v557, 4294901760
    %559 = vmatmul.mubr.f32.gmra.mrb[0].mxu0 %v558
    %v560 = vpop.f32.mrb[0].mxu0
    %v561 = vadd.f32 %v177, %v560
    %v562 = vpop.f32.mrb[0].mxu0
    %v563 = vadd.f32 %v177, %v562
    %564 = vmatprep.mubr.f32.mxu0 0.0
    %v565 = vand.u32 %v232, 4294901760
    %v566 = vsub.f32 %v232, %v565
    %v567 = vand.u32 %v566, 4294901760
    %v568 = vsub.f32 %v566, %v567
    %v569 = vand.u32 %v568, 4294901760
    %570 = vmatmul.mubr.f32.gmra.mrb[0].mxu0 %v569
    %v571 = vpop.f32.mrb[0].mxu0
    %v572 = vadd.f32 %v182, %v571
    %v573 = vpop.f32.mrb[0].mxu0
    %v574 = vadd.f32 %v182, %v573
    %575 = vmatprep.mubr.f32.mxu0 0.0
    %v576 = vand.u32 %v235, 4294901760
    %v577 = vsub.f32 %v235, %v576
    %v578 = vand.u32 %v577, 4294901760
    %v579 = vsub.f32 %v577, %v578
    %v580 = vand.u32 %v579, 4294901760
    %581 = vmatmul.mubr.f32.gmra.mrb[0].mxu0 %v580
    %v582 = vpop.f32.mrb[0].mxu0
    %v583 = vadd.f32 %v187, %v582
    %v584 = vpop.f32.mrb[0].mxu0
    %v585 = vadd.f32 %v187, %v584
    %586 = vmatprep.mubr.f32.mxu0 0.0
    %v587 = vand.u32 %v238, 4294901760
    %v588 = vsub.f32 %v238, %v587
    %v589 = vand.u32 %v588, 4294901760
    %v590 = vsub.f32 %v588, %v589
    %v591 = vand.u32 %v590, 4294901760
    %592 = vmatmul.mubr.f32.gmra.mrb[0].mxu0 %v591
    %v593 = vpop.f32.mrb[0].mxu0
    %v594 = vadd.f32 %v192, %v593
    %v595 = vpop.f32.mrb[0].mxu0
    %v596 = vadd.f32 %v192, %v595
    %597 = vdwg.mxu0
    %598 = vmatprep.subr.mxu0 0.0
    %v599 = vand.u32 %v241, 4294901760
    %v600 = vsub.f32 %v241, %v599
    %v601 = vand.u32 %v600, 4294901760
    %v602 = vsub.f32 %v600, %v601
    %v603 = vand.u32 %v602, 4294901760
    %604 = vmatpush1.xpose.msra.mxu0 %v603
    %605 = vmatprep.subr.mxu0 0.0
    %v606 = vand.u32 %v244, 4294901760
    %v607 = vsub.f32 %v244, %v606
    %v608 = vand.u32 %v607, 4294901760
    %v609 = vsub.f32 %v607, %v608
    %v610 = vand.u32 %v609, 4294901760
    %611 = vmatpush1.xpose.msra.mxu0 %v610
    %612 = vmatprep.subr.mxu0 0.0
    %v613 = vand.u32 %v247, 4294901760
    %v614 = vsub.f32 %v247, %v613
    %v615 = vand.u32 %v614, 4294901760
    %v616 = vsub.f32 %v614, %v615
    %v617 = vand.u32 %v616, 4294901760
    %618 = vmatpush1.xpose.msra.mxu0 %v617
    %619 = vmatprep.subr.mxu0 0.0
    %v620 = vand.u32 %v250, 4294901760
    %v621 = vsub.f32 %v250, %v620
    %v622 = vand.u32 %v621, 4294901760
    %v623 = vsub.f32 %v621, %v622
    %v624 = vand.u32 %v623, 4294901760
    %625 = vmatpush1.xpose.msra.mxu0 %v624
    %626 = vmatprep.subr.mxu0 0.0
    %v627 = vand.u32 %v253, 4294901760
    %v628 = vsub.f32 %v253, %v627
    %v629 = vand.u32 %v628, 4294901760
    %v630 = vsub.f32 %v628, %v629
    %v631 = vand.u32 %v630, 4294901760
    %632 = vmatpush1.xpose.msra.mxu0 %v631
    %633 = vmatprep.subr.mxu0 0.0
    %v634 = vand.u32 %v256, 4294901760
    %v635 = vsub.f32 %v256, %v634
    %v636 = vand.u32 %v635, 4294901760
    %v637 = vsub.f32 %v635, %v636
    %v638 = vand.u32 %v637, 4294901760
    %639 = vmatpush1.xpose.msra.mxu0 %v638
    %640 = vmatprep.subr.mxu0 0.0
    %v641 = vand.u32 %v259, 4294901760
    %v642 = vsub.f32 %v259, %v641
    %v643 = vand.u32 %v642, 4294901760
    %v644 = vsub.f32 %v642, %v643
    %v645 = vand.u32 %v644, 4294901760
    %646 = vmatpush1.xpose.msra.mxu0 %v645
    %647 = vmatprep.subr.mxu0 0.0
    %v648 = vand.u32 %v262, 4294901760
    %v649 = vsub.f32 %v262, %v648
    %v650 = vand.u32 %v649, 4294901760
    %v651 = vsub.f32 %v649, %v650
    %v652 = vand.u32 %v651, 4294901760
    %653 = vmatpush1.xpose.msra.mxu0 %v652
    %654 = vmatprep.subr.mxu0 0.0
    %v655 = vand.u32 %v265, 4294901760
    %v656 = vsub.f32 %v265, %v655
    %v657 = vand.u32 %v656, 4294901760
    %v658 = vsub.f32 %v656, %v657
    %v659 = vand.u32 %v658, 4294901760
    %660 = vmatpush1.xpose.msra.mxu0 %v659
    %661 = vmatprep.subr.mxu0 0.0
    %v662 = vand.u32 %v268, 4294901760
    %v663 = vsub.f32 %v268, %v662
    %v664 = vand.u32 %v663, 4294901760
    %v665 = vsub.f32 %v663, %v664
    %v666 = vand.u32 %v665, 4294901760
    %667 = vmatpush1.xpose.msra.mxu0 %v666
    %668 = vmatprep.subr.mxu0 0.0
    %v669 = vand.u32 %v271, 4294901760
    %v670 = vsub.f32 %v271, %v669
    %v671 = vand.u32 %v670, 4294901760
    %v672 = vsub.f32 %v670, %v671
    %v673 = vand.u32 %v672, 4294901760
    %674 = vmatpush1.xpose.msra.mxu0 %v673
    %675 = vmatprep.subr.mxu0 0.0
    %v676 = vand.u32 %v274, 4294901760
    %v677 = vsub.f32 %v274, %v676
    %v678 = vand.u32 %v677, 4294901760
    %v679 = vsub.f32 %v677, %v678
    %v680 = vand.u32 %v679, 4294901760
    %681 = vmatpush1.xpose.msra.mxu0 %v680
    %682 = vmatprep.subr.mxu0 0.0
    %v683 = vand.u32 %v277, 4294901760
    %v684 = vsub.f32 %v277, %v683
    %v685 = vand.u32 %v684, 4294901760
    %v686 = vsub.f32 %v684, %v685
    %v687 = vand.u32 %v686, 4294901760
    %688 = vmatpush1.xpose.msra.mxu0 %v687
    %689 = vmatprep.subr.mxu0 0.0
    %v690 = vand.u32 %v280, 4294901760
    %v691 = vsub.f32 %v280, %v690
    %v692 = vand.u32 %v691, 4294901760
    %v693 = vsub.f32 %v691, %v692
    %v694 = vand.u32 %v693, 4294901760
    %695 = vmatpush1.xpose.msra.mxu0 %v694
    %696 = vmatprep.subr.mxu0 0.0
    %v697 = vand.u32 %v283, 4294901760
    %v698 = vsub.f32 %v283, %v697
    %v699 = vand.u32 %v698, 4294901760
    %v700 = vsub.f32 %v698, %v699
    %v701 = vand.u32 %v700, 4294901760
    %702 = vmatpush1.xpose.msra.mxu0 %v701
    %703 = vmatprep.subr.mxu0 0.0
    %v704 = vand.u32 %v286, 4294901760
    %v705 = vsub.f32 %v286, %v704
    %v706 = vand.u32 %v705, 4294901760
    %v707 = vsub.f32 %v705, %v706
    %v708 = vand.u32 %v707, 4294901760
    %709 = vmatpush1.xpose.msra.mxu0 %v708
    %710 = vmatprep.subr.mxu0 0.0
    %v711 = vand.u32 %v289, 4294901760
    %v712 = vsub.f32 %v289, %v711
    %v713 = vand.u32 %v712, 4294901760
    %v714 = vsub.f32 %v712, %v713
    %v715 = vand.u32 %v714, 4294901760
    %716 = vmatpush1.xpose.msra.mxu0 %v715
    %717 = vmatprep.subr.mxu0 0.0
    %v718 = vand.u32 %v292, 4294901760
    %v719 = vsub.f32 %v292, %v718
    %v720 = vand.u32 %v719, 4294901760
    %v721 = vsub.f32 %v719, %v720
    %v722 = vand.u32 %v721, 4294901760
    %723 = vmatpush1.xpose.msra.mxu0 %v722
    %724 = vmatprep.subr.mxu0 0.0
    %v725 = vand.u32 %v295, 4294901760
    %v726 = vsub.f32 %v295, %v725
    %v727 = vand.u32 %v726, 4294901760
    %v728 = vsub.f32 %v726, %v727
    %v729 = vand.u32 %v728, 4294901760
    %730 = vmatpush1.xpose.msra.mxu0 %v729
    %731 = vmatprep.subr.mxu0 0.0
    %v732 = vand.u32 %v298, 4294901760
    %v733 = vsub.f32 %v298, %v732
    %v734 = vand.u32 %v733, 4294901760
    %v735 = vsub.f32 %v733, %v734
    %v736 = vand.u32 %v735, 4294901760
    %737 = vmatpush1.xpose.msra.mxu0 %v736
    %738 = vmatprep.subr.mxu0 0.0
    %v739 = vand.u32 %v301, 4294901760
    %v740 = vsub.f32 %v301, %v739
    %v741 = vand.u32 %v740, 4294901760
    %v742 = vsub.f32 %v740, %v741
    %v743 = vand.u32 %v742, 4294901760
    %744 = vmatpush1.xpose.msra.mxu0 %v743
    %745 = vmatprep.subr.mxu0 0.0
    %v746 = vand.u32 %v304, 4294901760
    %v747 = vsub.f32 %v304, %v746
    %v748 = vand.u32 %v747, 4294901760
    %v749 = vsub.f32 %v747, %v748
    %v750 = vand.u32 %v749, 4294901760
    %751 = vmatpush1.xpose.msra.mxu0 %v750
    %752 = vmatprep.subr.mxu0 0.0
    %v753 = vand.u32 %v307, 4294901760
    %v754 = vsub.f32 %v307, %v753
    %v755 = vand.u32 %v754, 4294901760
    %v756 = vsub.f32 %v754, %v755
    %v757 = vand.u32 %v756, 4294901760
    %758 = vmatpush1.xpose.msra.mxu0 %v757
    %759 = vmatprep.subr.mxu0 0.0
    %v760 = vand.u32 %v310, 4294901760
    %v761 = vsub.f32 %v310, %v760
    %v762 = vand.u32 %v761, 4294901760
    %v763 = vsub.f32 %v761, %v762
    %v764 = vand.u32 %v763, 4294901760
    %765 = vmatpush1.xpose.msra.mxu0 %v764
    %766 = vmatprep.subr.mxu0 0.0
    %v767 = vand.u32 %v313, 4294901760
    %v768 = vsub.f32 %v313, %v767
    %v769 = vand.u32 %v768, 4294901760
    %v770 = vsub.f32 %v768, %v769
    %v771 = vand.u32 %v770, 4294901760
    %772 = vmatpush1.xpose.msra.mxu0 %v771
    %773 = vmatprep.subr.mxu0 0.0
    %v774 = vand.u32 %v316, 4294901760
    %v775 = vsub.f32 %v316, %v774
    %v776 = vand.u32 %v775, 4294901760
    %v777 = vsub.f32 %v775, %v776
    %v778 = vand.u32 %v777, 4294901760
    %779 = vmatpush1.xpose.msra.mxu0 %v778
    %780 = vmatprep.subr.mxu0 0.0
    %v781 = vand.u32 %v319, 4294901760
    %v782 = vsub.f32 %v319, %v781
    %v783 = vand.u32 %v782, 4294901760
    %v784 = vsub.f32 %v782, %v783
    %v785 = vand.u32 %v784, 4294901760
    %786 = vmatpush1.xpose.msra.mxu0 %v785
    %787 = vmatprep.subr.mxu0 0.0
    %v788 = vand.u32 %v322, 4294901760
    %v789 = vsub.f32 %v322, %v788
    %v790 = vand.u32 %v789, 4294901760
    %v791 = vsub.f32 %v789, %v790
    %v792 = vand.u32 %v791, 4294901760
    %793 = vmatpush1.xpose.msra.mxu0 %v792
    %794 = vmatprep.subr.mxu0 0.0
    %v795 = vand.u32 %v325, 4294901760
    %v796 = vsub.f32 %v325, %v795
    %v797 = vand.u32 %v796, 4294901760
    %v798 = vsub.f32 %v796, %v797
    %v799 = vand.u32 %v798, 4294901760
    %800 = vmatpush1.xpose.msra.mxu0 %v799
    %801 = vmatprep.subr.mxu0 0.0
    %v802 = vand.u32 %v328, 4294901760
    %v803 = vsub.f32 %v328, %v802
    %v804 = vand.u32 %v803, 4294901760
    %v805 = vsub.f32 %v803, %v804
    %v806 = vand.u32 %v805, 4294901760
    %807 = vmatpush1.xpose.msra.mxu0 %v806
    %808 = vmatprep.subr.mxu0 0.0
    %v809 = vand.u32 %v331, 4294901760
    %v810 = vsub.f32 %v331, %v809
    %v811 = vand.u32 %v810, 4294901760
    %v812 = vsub.f32 %v810, %v811
    %v813 = vand.u32 %v812, 4294901760
    %814 = vmatpush1.xpose.msra.mxu0 %v813
    %815 = vmatprep.subr.mxu0 0.0
    %v816 = vand.u32 %v334, 4294901760
    %v817 = vsub.f32 %v334, %v816
    %v818 = vand.u32 %v817, 4294901760
    %v819 = vsub.f32 %v817, %v818
    %v820 = vand.u32 %v819, 4294901760
    %821 = vmatpush1.xpose.msra.mxu0 %v820
    %822 = vmatprep.mubr.f32.mxu0 0.0
    %v823 = vand.u32 %v196, 4294901760
    %824 = vmatmul.mubr.f32.gmra.mrb[0].mxu0 %v823
    %v825 = vpop.f32.mrb[0].mxu0
    %v826 = vadd.f32 %v440, %v825
    %v827 = vpop.f32.mrb[0].mxu0
    %v828 = vadd.f32 %v442, %v827
    %829 = vmatprep.mubr.f32.mxu0 0.0
    %v830 = vand.u32 %v199, 4294901760
    %831 = vmatmul.mubr.f32.gmra.mrb[0].mxu0 %v830
    %v832 = vpop.f32.mrb[0].mxu0
    %v833 = vadd.f32 %v451, %v832
    %v834 = vpop.f32.mrb[0].mxu0
    %v835 = vadd.f32 %v453, %v834
    %836 = vmatprep.mubr.f32.mxu0 0.0
    %v837 = vand.u32 %v202, 4294901760
    %838 = vmatmul.mubr.f32.gmra.mrb[0].mxu0 %v837
    %v839 = vpop.f32.mrb[0].mxu0
    %v840 = vadd.f32 %v462, %v839
    %v841 = vpop.f32.mrb[0].mxu0
    %v842 = vadd.f32 %v464, %v841
    %843 = vmatprep.mubr.f32.mxu0 0.0
    %v844 = vand.u32 %v205, 4294901760
    %845 = vmatmul.mubr.f32.gmra.mrb[0].mxu0 %v844
    %v846 = vpop.f32.mrb[0].mxu0
    %v847 = vadd.f32 %v473, %v846
    %v848 = vpop.f32.mrb[0].mxu0
    %v849 = vadd.f32 %v475, %v848
    %850 = vmatprep.mubr.f32.mxu0 0.0
    %v851 = vand.u32 %v208, 4294901760
    %852 = vmatmul.mubr.f32.gmra.mrb[0].mxu0 %v851
    %v853 = vpop.f32.mrb[0].mxu0
    %v854 = vadd.f32 %v484, %v853
    %v855 = vpop.f32.mrb[0].mxu0
    %v856 = vadd.f32 %v486, %v855
    %857 = vmatprep.mubr.f32.mxu0 0.0
    %v858 = vand.u32 %v211, 4294901760
    %859 = vmatmul.mubr.f32.gmra.mrb[0].mxu0 %v858
    %v860 = vpop.f32.mrb[0].mxu0
    %v861 = vadd.f32 %v495, %v860
    %v862 = vpop.f32.mrb[0].mxu0
    %v863 = vadd.f32 %v497, %v862
    %864 = vmatprep.mubr.f32.mxu0 0.0
    %v865 = vand.u32 %v214, 4294901760
    %866 = vmatmul.mubr.f32.gmra.mrb[0].mxu0 %v865
    %v867 = vpop.f32.mrb[0].mxu0
    %v868 = vadd.f32 %v506, %v867
    %v869 = vpop.f32.mrb[0].mxu0
    %v870 = vadd.f32 %v508, %v869
    %871 = vmatprep.mubr.f32.mxu0 0.0
    %v872 = vand.u32 %v217, 4294901760
    %873 = vmatmul.mubr.f32.gmra.mrb[0].mxu0 %v872
    %v874 = vpop.f32.mrb[0].mxu0
    %v875 = vadd.f32 %v517, %v874
    %v876 = vpop.f32.mrb[0].mxu0
    %v877 = vadd.f32 %v519, %v876
    %878 = vmatprep.mubr.f32.mxu0 0.0
    %v879 = vand.u32 %v220, 4294901760
    %880 = vmatmul.mubr.f32.gmra.mrb[0].mxu0 %v879
    %v881 = vpop.f32.mrb[0].mxu0
    %v882 = vadd.f32 %v528, %v881
    %v883 = vpop.f32.mrb[0].mxu0
    %v884 = vadd.f32 %v530, %v883
    %885 = vmatprep.mubr.f32.mxu0 0.0
    %v886 = vand.u32 %v223, 4294901760
    %887 = vmatmul.mubr.f32.gmra.mrb[0].mxu0 %v886
    %v888 = vpop.f32.mrb[0].mxu0
    %v889 = vadd.f32 %v539, %v888
    %v890 = vpop.f32.mrb[0].mxu0
    %v891 = vadd.f32 %v541, %v890
    %892 = vmatprep.mubr.f32.mxu0 0.0
    %v893 = vand.u32 %v226, 4294901760
    %894 = vmatmul.mubr.f32.gmra.mrb[0].mxu0 %v893
    %v895 = vpop.f32.mrb[0].mxu0
    %v896 = vadd.f32 %v550, %v895
    %v897 = vpop.f32.mrb[0].mxu0
    %v898 = vadd.f32 %v552, %v897
    %899 = vmatprep.mubr.f32.mxu0 0.0
    %v900 = vand.u32 %v229, 4294901760
    %901 = vmatmul.mubr.f32.gmra.mrb[0].mxu0 %v900
    %v902 = vpop.f32.mrb[0].mxu0
    %v903 = vadd.f32 %v561, %v902
    %v904 = vpop.f32.mrb[0].mxu0
    %v905 = vadd.f32 %v563, %v904
    %906 = vmatprep.mubr.f32.mxu0 0.0
    %v907 = vand.u32 %v232, 4294901760
    %908 = vmatmul.mubr.f32.gmra.mrb[0].mxu0 %v907
    %v909 = vpop.f32.mrb[0].mxu0
    %v910 = vadd.f32 %v572, %v909
    %v911 = vpop.f32.mrb[0].mxu0
    %v912 = vadd.f32 %v574, %v911
    %913 = vmatprep.mubr.f32.mxu0 0.0
    %v914 = vand.u32 %v235, 4294901760
    %915 = vmatmul.mubr.f32.gmra.mrb[0].mxu0 %v914
    %v916 = vpop.f32.mrb[0].mxu0
    %v917 = vadd.f32 %v583, %v916
    %v918 = vpop.f32.mrb[0].mxu0
    %v919 = vadd.f32 %v585, %v918
    %920 = vmatprep.mubr.f32.mxu0 0.0
    %v921 = vand.u32 %v238, 4294901760
    %922 = vmatmul.mubr.f32.gmra.mrb[0].mxu0 %v921
    %v923 = vpop.f32.mrb[0].mxu0
    %v924 = vadd.f32 %v594, %v923
    %v925 = vpop.f32.mrb[0].mxu0
    %v926 = vadd.f32 %v596, %v925
    %927 = vdwg.mxu0
    %928 = vmatprep.subr.mxu0 0.0
    %v929 = vand.u32 %v241, 4294901760
    %v930 = vsub.f32 %v241, %v929
    %931 = vmatpush1.xpose.msra.mxu0 %v930
    %932 = vmatprep.subr.mxu0 0.0
    %v933 = vand.u32 %v244, 4294901760
    %v934 = vsub.f32 %v244, %v933
    %935 = vmatpush1.xpose.msra.mxu0 %v934
    %936 = vmatprep.subr.mxu0 0.0
    %v937 = vand.u32 %v247, 4294901760
    %v938 = vsub.f32 %v247, %v937
    %939 = vmatpush1.xpose.msra.mxu0 %v938
    %940 = vmatprep.subr.mxu0 0.0
    %v941 = vand.u32 %v250, 4294901760
    %v942 = vsub.f32 %v250, %v941
    %943 = vmatpush1.xpose.msra.mxu0 %v942
    %944 = vmatprep.subr.mxu0 0.0
    %v945 = vand.u32 %v253, 4294901760
    %v946 = vsub.f32 %v253, %v945
    %947 = vmatpush1.xpose.msra.mxu0 %v946
    %948 = vmatprep.subr.mxu0 0.0
    %v949 = vand.u32 %v256, 4294901760
    %v950 = vsub.f32 %v256, %v949
    %951 = vmatpush1.xpose.msra.mxu0 %v950
    %952 = vmatprep.subr.mxu0 0.0
    %v953 = vand.u32 %v259, 4294901760
    %v954 = vsub.f32 %v259, %v953
    %955 = vmatpush1.xpose.msra.mxu0 %v954
    %956 = vmatprep.subr.mxu0 0.0
    %v957 = vand.u32 %v262, 4294901760
    %v958 = vsub.f32 %v262, %v957
    %959 = vmatpush1.xpose.msra.mxu0 %v958
    %960 = vmatprep.subr.mxu0 0.0
    %v961 = vand.u32 %v265, 4294901760
    %v962 = vsub.f32 %v265, %v961
    %963 = vmatpush1.xpose.msra.mxu0 %v962
    %964 = vmatprep.subr.mxu0 0.0
    %v965 = vand.u32 %v268, 4294901760
    %v966 = vsub.f32 %v268, %v965
    %967 = vmatpush1.xpose.msra.mxu0 %v966
    %968 = vmatprep.subr.mxu0 0.0
    %v969 = vand.u32 %v271, 4294901760
    %v970 = vsub.f32 %v271, %v969
    %971 = vmatpush1.xpose.msra.mxu0 %v970
    %972 = vmatprep.subr.mxu0 0.0
    %v973 = vand.u32 %v274, 4294901760
    %v974 = vsub.f32 %v274, %v973
    %975 = vmatpush1.xpose.msra.mxu0 %v974
    %976 = vmatprep.subr.mxu0 0.0
    %v977 = vand.u32 %v277, 4294901760
    %v978 = vsub.f32 %v277, %v977
    %979 = vmatpush1.xpose.msra.mxu0 %v978
    %980 = vmatprep.subr.mxu0 0.0
    %v981 = vand.u32 %v280, 4294901760
    %v982 = vsub.f32 %v280, %v981
    %983 = vmatpush1.xpose.msra.mxu0 %v982
    %984 = vmatprep.subr.mxu0 0.0
    %v985 = vand.u32 %v283, 4294901760
    %v986 = vsub.f32 %v283, %v985
    %987 = vmatpush1.xpose.msra.mxu0 %v986
    %988 = vmatprep.subr.mxu0 0.0
    %v989 = vand.u32 %v286, 4294901760
    %v990 = vsub.f32 %v286, %v989
    %991 = vmatpush1.xpose.msra.mxu0 %v990
    %992 = vmatprep.subr.mxu0 0.0
    %v993 = vand.u32 %v289, 4294901760
    %v994 = vsub.f32 %v289, %v993
    %995 = vmatpush1.xpose.msra.mxu0 %v994
    %996 = vmatprep.subr.mxu0 0.0
    %v997 = vand.u32 %v292, 4294901760
    %v998 = vsub.f32 %v292, %v997
    %999 = vmatpush1.xpose.msra.mxu0 %v998
    %1000 = vmatprep.subr.mxu0 0.0
    %v1001 = vand.u32 %v295, 4294901760
    %v1002 = vsub.f32 %v295, %v1001
    %1003 = vmatpush1.xpose.msra.mxu0 %v1002
    %1004 = vmatprep.subr.mxu0 0.0
    %v1005 = vand.u32 %v298, 4294901760
    %v1006 = vsub.f32 %v298, %v1005
    %1007 = vmatpush1.xpose.msra.mxu0 %v1006
    %1008 = vmatprep.subr.mxu0 0.0
    %v1009 = vand.u32 %v301, 4294901760
    %v1010 = vsub.f32 %v301, %v1009
    %1011 = vmatpush1.xpose.msra.mxu0 %v1010
    %1012 = vmatprep.subr.mxu0 0.0
    %v1013 = vand.u32 %v304, 4294901760
    %v1014 = vsub.f32 %v304, %v1013
    %1015 = vmatpush1.xpose.msra.mxu0 %v1014
    %1016 = vmatprep.subr.mxu0 0.0
    %v1017 = vand.u32 %v307, 4294901760
    %v1018 = vsub.f32 %v307, %v1017
    %1019 = vmatpush1.xpose.msra.mxu0 %v1018
    %1020 = vmatprep.subr.mxu0 0.0
    %v1021 = vand.u32 %v310, 4294901760
    %v1022 = vsub.f32 %v310, %v1021
    %1023 = vmatpush1.xpose.msra.mxu0 %v1022
    %1024 = vmatprep.subr.mxu0 0.0
    %v1025 = vand.u32 %v313, 4294901760
    %v1026 = vsub.f32 %v313, %v1025
    %1027 = vmatpush1.xpose.msra.mxu0 %v1026
    %1028 = vmatprep.subr.mxu0 0.0
    %v1029 = vand.u32 %v316, 4294901760
    %v1030 = vsub.f32 %v316, %v1029
    %1031 = vmatpush1.xpose.msra.mxu0 %v1030
    %1032 = vmatprep.subr.mxu0 0.0
    %v1033 = vand.u32 %v319, 4294901760
    %v1034 = vsub.f32 %v319, %v1033
    %1035 = vmatpush1.xpose.msra.mxu0 %v1034
    %1036 = vmatprep.subr.mxu0 0.0
    %v1037 = vand.u32 %v322, 4294901760
    %v1038 = vsub.f32 %v322, %v1037
    %1039 = vmatpush1.xpose.msra.mxu0 %v1038
    %1040 = vmatprep.subr.mxu0 0.0
    %v1041 = vand.u32 %v325, 4294901760
    %v1042 = vsub.f32 %v325, %v1041
    %1043 = vmatpush1.xpose.msra.mxu0 %v1042
    %1044 = vmatprep.subr.mxu0 0.0
    %v1045 = vand.u32 %v328, 4294901760
    %v1046 = vsub.f32 %v328, %v1045
    %1047 = vmatpush1.xpose.msra.mxu0 %v1046
    %1048 = vmatprep.subr.mxu0 0.0
    %v1049 = vand.u32 %v331, 4294901760
    %v1050 = vsub.f32 %v331, %v1049
    %1051 = vmatpush1.xpose.msra.mxu0 %v1050
    %1052 = vmatprep.subr.mxu0 0.0
    %v1053 = vand.u32 %v334, 4294901760
    %v1054 = vsub.f32 %v334, %v1053
    %1055 = vmatpush1.xpose.msra.mxu0 %v1054
    %1056 = vmatprep.mubr.f32.mxu0 0.0
    %v1057 = vand.u32 %v196, 4294901760
    %v1058 = vsub.f32 %v196, %v1057
    %1059 = vmatmul.mubr.f32.gmra.mrb[0].mxu0 %v1058
    %v1060 = vpop.f32.mrb[0].mxu0
    %v1061 = vadd.f32 %v826, %v1060
    %v1062 = vpop.f32.mrb[0].mxu0
    %v1063 = vadd.f32 %v828, %v1062
    %1064 = vmatprep.mubr.f32.mxu0 0.0
    %v1065 = vand.u32 %v199, 4294901760
    %v1066 = vsub.f32 %v199, %v1065
    %1067 = vmatmul.mubr.f32.gmra.mrb[0].mxu0 %v1066
    %v1068 = vpop.f32.mrb[0].mxu0
    %v1069 = vadd.f32 %v833, %v1068
    %v1070 = vpop.f32.mrb[0].mxu0
    %v1071 = vadd.f32 %v835, %v1070
    %1072 = vmatprep.mubr.f32.mxu0 0.0
    %v1073 = vand.u32 %v202, 4294901760
    %v1074 = vsub.f32 %v202, %v1073
    %1075 = vmatmul.mubr.f32.gmra.mrb[0].mxu0 %v1074
    %v1076 = vpop.f32.mrb[0].mxu0
    %v1077 = vadd.f32 %v840, %v1076
    %v1078 = vpop.f32.mrb[0].mxu0
    %v1079 = vadd.f32 %v842, %v1078
    %1080 = vmatprep.mubr.f32.mxu0 0.0
    %v1081 = vand.u32 %v205, 4294901760
    %v1082 = vsub.f32 %v205, %v1081
    %1083 = vmatmul.mubr.f32.gmra.mrb[0].mxu0 %v1082
    %v1084 = vpop.f32.mrb[0].mxu0
    %v1085 = vadd.f32 %v847, %v1084
    %v1086 = vpop.f32.mrb[0].mxu0
    %v1087 = vadd.f32 %v849, %v1086
    %1088 = vmatprep.mubr.f32.mxu0 0.0
    %v1089 = vand.u32 %v208, 4294901760
    %v1090 = vsub.f32 %v208, %v1089
    %1091 = vmatmul.mubr.f32.gmra.mrb[0].mxu0 %v1090
    %v1092 = vpop.f32.mrb[0].mxu0
    %v1093 = vadd.f32 %v854, %v1092
    %v1094 = vpop.f32.mrb[0].mxu0
    %v1095 = vadd.f32 %v856, %v1094
    %1096 = vmatprep.mubr.f32.mxu0 0.0
    %v1097 = vand.u32 %v211, 4294901760
    %v1098 = vsub.f32 %v211, %v1097
    %1099 = vmatmul.mubr.f32.gmra.mrb[0].mxu0 %v1098
    %v1100 = vpop.f32.mrb[0].mxu0
    %v1101 = vadd.f32 %v861, %v1100
    %v1102 = vpop.f32.mrb[0].mxu0
    %v1103 = vadd.f32 %v863, %v1102
    %1104 = vmatprep.mubr.f32.mxu0 0.0
    %v1105 = vand.u32 %v214, 4294901760
    %v1106 = vsub.f32 %v214, %v1105
    %1107 = vmatmul.mubr.f32.gmra.mrb[0].mxu0 %v1106
    %v1108 = vpop.f32.mrb[0].mxu0
    %v1109 = vadd.f32 %v868, %v1108
    %v1110 = vpop.f32.mrb[0].mxu0
    %v1111 = vadd.f32 %v870, %v1110
    %1112 = vmatprep.mubr.f32.mxu0 0.0
    %v1113 = vand.u32 %v217, 4294901760
    %v1114 = vsub.f32 %v217, %v1113
    %1115 = vmatmul.mubr.f32.gmra.mrb[0].mxu0 %v1114
    %v1116 = vpop.f32.mrb[0].mxu0
    %v1117 = vadd.f32 %v875, %v1116
    %v1118 = vpop.f32.mrb[0].mxu0
    %v1119 = vadd.f32 %v877, %v1118
    %1120 = vmatprep.mubr.f32.mxu0 0.0
    %v1121 = vand.u32 %v220, 4294901760
    %v1122 = vsub.f32 %v220, %v1121
    %1123 = vmatmul.mubr.f32.gmra.mrb[0].mxu0 %v1122
    %v1124 = vpop.f32.mrb[0].mxu0
    %v1125 = vadd.f32 %v882, %v1124
    %v1126 = vpop.f32.mrb[0].mxu0
    %v1127 = vadd.f32 %v884, %v1126
    %1128 = vmatprep.mubr.f32.mxu0 0.0
    %v1129 = vand.u32 %v223, 4294901760
    %v1130 = vsub.f32 %v223, %v1129
    %1131 = vmatmul.mubr.f32.gmra.mrb[0].mxu0 %v1130
    %v1132 = vpop.f32.mrb[0].mxu0
    %v1133 = vadd.f32 %v889, %v1132
    %v1134 = vpop.f32.mrb[0].mxu0
    %v1135 = vadd.f32 %v891, %v1134
    %1136 = vmatprep.mubr.f32.mxu0 0.0
    %v1137 = vand.u32 %v226, 4294901760
    %v1138 = vsub.f32 %v226, %v1137
    %1139 = vmatmul.mubr.f32.gmra.mrb[0].mxu0 %v1138
    %v1140 = vpop.f32.mrb[0].mxu0
    %v1141 = vadd.f32 %v896, %v1140
    %v1142 = vpop.f32.mrb[0].mxu0
    %v1143 = vadd.f32 %v898, %v1142
    %1144 = vmatprep.mubr.f32.mxu0 0.0
    %v1145 = vand.u32 %v229, 4294901760
    %v1146 = vsub.f32 %v229, %v1145
    %1147 = vmatmul.mubr.f32.gmra.mrb[0].mxu0 %v1146
    %v1148 = vpop.f32.mrb[0].mxu0
    %v1149 = vadd.f32 %v903, %v1148
    %v1150 = vpop.f32.mrb[0].mxu0
    %v1151 = vadd.f32 %v905, %v1150
    %1152 = vmatprep.mubr.f32.mxu0 0.0
    %v1153 = vand.u32 %v232, 4294901760
    %v1154 = vsub.f32 %v232, %v1153
    %1155 = vmatmul.mubr.f32.gmra.mrb[0].mxu0 %v1154
    %v1156 = vpop.f32.mrb[0].mxu0
    %v1157 = vadd.f32 %v910, %v1156
    %v1158 = vpop.f32.mrb[0].mxu0
    %v1159 = vadd.f32 %v912, %v1158
    %1160 = vmatprep.mubr.f32.mxu0 0.0
    %v1161 = vand.u32 %v235, 4294901760
    %v1162 = vsub.f32 %v235, %v1161
    %1163 = vmatmul.mubr.f32.gmra.mrb[0].mxu0 %v1162
    %v1164 = vpop.f32.mrb[0].mxu0
    %v1165 = vadd.f32 %v917, %v1164
    %v1166 = vpop.f32.mrb[0].mxu0
    %v1167 = vadd.f32 %v919, %v1166
    %1168 = vmatprep.mubr.f32.mxu0 0.0
    %v1169 = vand.u32 %v238, 4294901760
    %v1170 = vsub.f32 %v238, %v1169
    %1171 = vmatmul.mubr.f32.gmra.mrb[0].mxu0 %v1170
    %v1172 = vpop.f32.mrb[0].mxu0
    %v1173 = vadd.f32 %v924, %v1172
    %v1174 = vpop.f32.mrb[0].mxu0
    %v1175 = vadd.f32 %v926, %v1174
    %1176 = vdwg.mxu0
    %1177 = vmatprep.subr.mxu0 0.0
    %v1178 = vand.u32 %v241, 4294901760
    %1179 = vmatpush1.xpose.msra.mxu0 %v1178
    %1180 = vmatprep.subr.mxu0 0.0
    %v1181 = vand.u32 %v244, 4294901760
    %1182 = vmatpush1.xpose.msra.mxu0 %v1181
    %1183 = vmatprep.subr.mxu0 0.0
    %v1184 = vand.u32 %v247, 4294901760
    %1185 = vmatpush1.xpose.msra.mxu0 %v1184
    %1186 = vmatprep.subr.mxu0 0.0
    %v1187 = vand.u32 %v250, 4294901760
    %1188 = vmatpush1.xpose.msra.mxu0 %v1187
    %1189 = vmatprep.subr.mxu0 0.0
    %v1190 = vand.u32 %v253, 4294901760
    %1191 = vmatpush1.xpose.msra.mxu0 %v1190
    %1192 = vmatprep.subr.mxu0 0.0
    %v1193 = vand.u32 %v256, 4294901760
    %1194 = vmatpush1.xpose.msra.mxu0 %v1193
    %1195 = vmatprep.subr.mxu0 0.0
    %v1196 = vand.u32 %v259, 4294901760
    %1197 = vmatpush1.xpose.msra.mxu0 %v1196
    %1198 = vmatprep.subr.mxu0 0.0
    %v1199 = vand.u32 %v262, 4294901760
    %1200 = vmatpush1.xpose.msra.mxu0 %v1199
    %1201 = vmatprep.subr.mxu0 0.0
    %v1202 = vand.u32 %v265, 4294901760
    %1203 = vmatpush1.xpose.msra.mxu0 %v1202
    %1204 = vmatprep.subr.mxu0 0.0
    %v1205 = vand.u32 %v268, 4294901760
    %1206 = vmatpush1.xpose.msra.mxu0 %v1205
    %1207 = vmatprep.subr.mxu0 0.0
    %v1208 = vand.u32 %v271, 4294901760
    %1209 = vmatpush1.xpose.msra.mxu0 %v1208
    %1210 = vmatprep.subr.mxu0 0.0
    %v1211 = vand.u32 %v274, 4294901760
    %1212 = vmatpush1.xpose.msra.mxu0 %v1211
    %1213 = vmatprep.subr.mxu0 0.0
    %v1214 = vand.u32 %v277, 4294901760
    %1215 = vmatpush1.xpose.msra.mxu0 %v1214
    %1216 = vmatprep.subr.mxu0 0.0
    %v1217 = vand.u32 %v280, 4294901760
    %1218 = vmatpush1.xpose.msra.mxu0 %v1217
    %1219 = vmatprep.subr.mxu0 0.0
    %v1220 = vand.u32 %v283, 4294901760
    %1221 = vmatpush1.xpose.msra.mxu0 %v1220
    %1222 = vmatprep.subr.mxu0 0.0
    %v1223 = vand.u32 %v286, 4294901760
    %1224 = vmatpush1.xpose.msra.mxu0 %v1223
    %1225 = vmatprep.subr.mxu0 0.0
    %v1226 = vand.u32 %v289, 4294901760
    %1227 = vmatpush1.xpose.msra.mxu0 %v1226
    %1228 = vmatprep.subr.mxu0 0.0
    %v1229 = vand.u32 %v292, 4294901760
    %1230 = vmatpush1.xpose.msra.mxu0 %v1229
    %1231 = vmatprep.subr.mxu0 0.0
    %v1232 = vand.u32 %v295, 4294901760
    %1233 = vmatpush1.xpose.msra.mxu0 %v1232
    %1234 = vmatprep.subr.mxu0 0.0
    %v1235 = vand.u32 %v298, 4294901760
    %1236 = vmatpush1.xpose.msra.mxu0 %v1235
    %1237 = vmatprep.subr.mxu0 0.0
    %v1238 = vand.u32 %v301, 4294901760
    %1239 = vmatpush1.xpose.msra.mxu0 %v1238
    %1240 = vmatprep.subr.mxu0 0.0
    %v1241 = vand.u32 %v304, 4294901760
    %1242 = vmatpush1.xpose.msra.mxu0 %v1241
    %1243 = vmatprep.subr.mxu0 0.0
    %v1244 = vand.u32 %v307, 4294901760
    %1245 = vmatpush1.xpose.msra.mxu0 %v1244
    %1246 = vmatprep.subr.mxu0 0.0
    %v1247 = vand.u32 %v310, 4294901760
    %1248 = vmatpush1.xpose.msra.mxu0 %v1247
    %1249 = vmatprep.subr.mxu0 0.0
    %v1250 = vand.u32 %v313, 4294901760
    %1251 = vmatpush1.xpose.msra.mxu0 %v1250
    %1252 = vmatprep.subr.mxu0 0.0
    %v1253 = vand.u32 %v316, 4294901760
    %1254 = vmatpush1.xpose.msra.mxu0 %v1253
    %1255 = vmatprep.subr.mxu0 0.0
    %v1256 = vand.u32 %v319, 4294901760
    %1257 = vmatpush1.xpose.msra.mxu0 %v1256
    %1258 = vmatprep.subr.mxu0 0.0
    %v1259 = vand.u32 %v322, 4294901760
    %1260 = vmatpush1.xpose.msra.mxu0 %v1259
    %1261 = vmatprep.subr.mxu0 0.0
    %v1262 = vand.u32 %v325, 4294901760
    %1263 = vmatpush1.xpose.msra.mxu0 %v1262
    %1264 = vmatprep.subr.mxu0 0.0
    %v1265 = vand.u32 %v328, 4294901760
    %1266 = vmatpush1.xpose.msra.mxu0 %v1265
    %1267 = vmatprep.subr.mxu0 0.0
    %v1268 = vand.u32 %v331, 4294901760
    %1269 = vmatpush1.xpose.msra.mxu0 %v1268
    %1270 = vmatprep.subr.mxu0 0.0
    %v1271 = vand.u32 %v334, 4294901760
    %1272 = vmatpush1.xpose.msra.mxu0 %v1271
    %1273 = vmatprep.mubr.f32.mxu0 0.0
    %v1274 = vand.u32 %v196, 4294901760
    %v1275 = vsub.f32 %v196, %v1274
    %v1276 = vand.u32 %v1275, 4294901760
    %1277 = vmatmul.mubr.f32.gmra.mrb[0].mxu0 %v1276
    %v1278 = vpop.f32.mrb[0].mxu0
    %v1279 = vadd.f32 %v1061, %v1278
    %v1280 = vpop.f32.mrb[0].mxu0
    %v1281 = vadd.f32 %v1063, %v1280
    %1282 = vmatprep.mubr.f32.mxu0 0.0
    %v1283 = vand.u32 %v199, 4294901760
    %v1284 = vsub.f32 %v199, %v1283
    %v1285 = vand.u32 %v1284, 4294901760
    %1286 = vmatmul.mubr.f32.gmra.mrb[0].mxu0 %v1285
    %v1287 = vpop.f32.mrb[0].mxu0
    %v1288 = vadd.f32 %v1069, %v1287
    %v1289 = vpop.f32.mrb[0].mxu0
    %v1290 = vadd.f32 %v1071, %v1289
    %1291 = vmatprep.mubr.f32.mxu0 0.0
    %v1292 = vand.u32 %v202, 4294901760
    %v1293 = vsub.f32 %v202, %v1292
    %v1294 = vand.u32 %v1293, 4294901760
    %1295 = vmatmul.mubr.f32.gmra.mrb[0].mxu0 %v1294
    %v1296 = vpop.f32.mrb[0].mxu0
    %v1297 = vadd.f32 %v1077, %v1296
    %v1298 = vpop.f32.mrb[0].mxu0
    %v1299 = vadd.f32 %v1079, %v1298
    %1300 = vmatprep.mubr.f32.mxu0 0.0
    %v1301 = vand.u32 %v205, 4294901760
    %v1302 = vsub.f32 %v205, %v1301
    %v1303 = vand.u32 %v1302, 4294901760
    %1304 = vmatmul.mubr.f32.gmra.mrb[0].mxu0 %v1303
    %v1305 = vpop.f32.mrb[0].mxu0
    %v1306 = vadd.f32 %v1085, %v1305
    %v1307 = vpop.f32.mrb[0].mxu0
    %v1308 = vadd.f32 %v1087, %v1307
    %1309 = vmatprep.mubr.f32.mxu0 0.0
    %v1310 = vand.u32 %v208, 4294901760
    %v1311 = vsub.f32 %v208, %v1310
    %v1312 = vand.u32 %v1311, 4294901760
    %1313 = vmatmul.mubr.f32.gmra.mrb[0].mxu0 %v1312
    %v1314 = vpop.f32.mrb[0].mxu0
    %v1315 = vadd.f32 %v1093, %v1314
    %v1316 = vpop.f32.mrb[0].mxu0
    %v1317 = vadd.f32 %v1095, %v1316
    %1318 = vmatprep.mubr.f32.mxu0 0.0
    %v1319 = vand.u32 %v211, 4294901760
    %v1320 = vsub.f32 %v211, %v1319
    %v1321 = vand.u32 %v1320, 4294901760
    %1322 = vmatmul.mubr.f32.gmra.mrb[0].mxu0 %v1321
    %v1323 = vpop.f32.mrb[0].mxu0
    %v1324 = vadd.f32 %v1101, %v1323
    %v1325 = vpop.f32.mrb[0].mxu0
    %v1326 = vadd.f32 %v1103, %v1325
    %1327 = vmatprep.mubr.f32.mxu0 0.0
    %v1328 = vand.u32 %v214, 4294901760
    %v1329 = vsub.f32 %v214, %v1328
    %v1330 = vand.u32 %v1329, 4294901760
    %1331 = vmatmul.mubr.f32.gmra.mrb[0].mxu0 %v1330
    %v1332 = vpop.f32.mrb[0].mxu0
    %v1333 = vadd.f32 %v1109, %v1332
    %v1334 = vpop.f32.mrb[0].mxu0
    %v1335 = vadd.f32 %v1111, %v1334
    %1336 = vmatprep.mubr.f32.mxu0 0.0
    %v1337 = vand.u32 %v217, 4294901760
    %v1338 = vsub.f32 %v217, %v1337
    %v1339 = vand.u32 %v1338, 4294901760
    %1340 = vmatmul.mubr.f32.gmra.mrb[0].mxu0 %v1339
    %v1341 = vpop.f32.mrb[0].mxu0
    %v1342 = vadd.f32 %v1117, %v1341
    %v1343 = vpop.f32.mrb[0].mxu0
    %v1344 = vadd.f32 %v1119, %v1343
    %1345 = vmatprep.mubr.f32.mxu0 0.0
    %v1346 = vand.u32 %v220, 4294901760
    %v1347 = vsub.f32 %v220, %v1346
    %v1348 = vand.u32 %v1347, 4294901760
    %1349 = vmatmul.mubr.f32.gmra.mrb[0].mxu0 %v1348
    %v1350 = vpop.f32.mrb[0].mxu0
    %v1351 = vadd.f32 %v1125, %v1350
    %v1352 = vpop.f32.mrb[0].mxu0
    %v1353 = vadd.f32 %v1127, %v1352
    %1354 = vmatprep.mubr.f32.mxu0 0.0
    %v1355 = vand.u32 %v223, 4294901760
    %v1356 = vsub.f32 %v223, %v1355
    %v1357 = vand.u32 %v1356, 4294901760
    %1358 = vmatmul.mubr.f32.gmra.mrb[0].mxu0 %v1357
    %v1359 = vpop.f32.mrb[0].mxu0
    %v1360 = vadd.f32 %v1133, %v1359
    %v1361 = vpop.f32.mrb[0].mxu0
    %v1362 = vadd.f32 %v1135, %v1361
    %1363 = vmatprep.mubr.f32.mxu0 0.0
    %v1364 = vand.u32 %v226, 4294901760
    %v1365 = vsub.f32 %v226, %v1364
    %v1366 = vand.u32 %v1365, 4294901760
    %1367 = vmatmul.mubr.f32.gmra.mrb[0].mxu0 %v1366
    %v1368 = vpop.f32.mrb[0].mxu0
    %v1369 = vadd.f32 %v1141, %v1368
    %v1370 = vpop.f32.mrb[0].mxu0
    %v1371 = vadd.f32 %v1143, %v1370
    %1372 = vmatprep.mubr.f32.mxu0 0.0
    %v1373 = vand.u32 %v229, 4294901760
    %v1374 = vsub.f32 %v229, %v1373
    %v1375 = vand.u32 %v1374, 4294901760
    %1376 = vmatmul.mubr.f32.gmra.mrb[0].mxu0 %v1375
    %v1377 = vpop.f32.mrb[0].mxu0
    %v1378 = vadd.f32 %v1149, %v1377
    %v1379 = vpop.f32.mrb[0].mxu0
    %v1380 = vadd.f32 %v1151, %v1379
    %1381 = vmatprep.mubr.f32.mxu0 0.0
    %v1382 = vand.u32 %v232, 4294901760
    %v1383 = vsub.f32 %v232, %v1382
    %v1384 = vand.u32 %v1383, 4294901760
    %1385 = vmatmul.mubr.f32.gmra.mrb[0].mxu0 %v1384
    %v1386 = vpop.f32.mrb[0].mxu0
    %v1387 = vadd.f32 %v1157, %v1386
    %v1388 = vpop.f32.mrb[0].mxu0
    %v1389 = vadd.f32 %v1159, %v1388
    %1390 = vmatprep.mubr.f32.mxu0 0.0
    %v1391 = vand.u32 %v235, 4294901760
    %v1392 = vsub.f32 %v235, %v1391
    %v1393 = vand.u32 %v1392, 4294901760
    %1394 = vmatmul.mubr.f32.gmra.mrb[0].mxu0 %v1393
    %v1395 = vpop.f32.mrb[0].mxu0
    %v1396 = vadd.f32 %v1165, %v1395
    %v1397 = vpop.f32.mrb[0].mxu0
    %v1398 = vadd.f32 %v1167, %v1397
    %1399 = vmatprep.mubr.f32.mxu0 0.0
    %v1400 = vand.u32 %v238, 4294901760
    %v1401 = vsub.f32 %v238, %v1400
    %v1402 = vand.u32 %v1401, 4294901760
    %1403 = vmatmul.mubr.f32.gmra.mrb[0].mxu0 %v1402
    %v1404 = vpop.f32.mrb[0].mxu0
    %v1405 = vadd.f32 %v1173, %v1404
    %v1406 = vpop.f32.mrb[0].mxu0
    %v1407 = vadd.f32 %v1175, %v1406
    %1408 = vdwg.mxu0
    %1409 = vmatprep.subr.mxu0 0.0
    %v1410 = vand.u32 %v241, 4294901760
    %v1411 = vsub.f32 %v241, %v1410
    %v1412 = vand.u32 %v1411, 4294901760
    %1413 = vmatpush1.xpose.msra.mxu0 %v1412
    %1414 = vmatprep.subr.mxu0 0.0
    %v1415 = vand.u32 %v244, 4294901760
    %v1416 = vsub.f32 %v244, %v1415
    %v1417 = vand.u32 %v1416, 4294901760
    %1418 = vmatpush1.xpose.msra.mxu0 %v1417
    %1419 = vmatprep.subr.mxu0 0.0
    %v1420 = vand.u32 %v247, 4294901760
    %v1421 = vsub.f32 %v247, %v1420
    %v1422 = vand.u32 %v1421, 4294901760
    %1423 = vmatpush1.xpose.msra.mxu0 %v1422
    %1424 = vmatprep.subr.mxu0 0.0
    %v1425 = vand.u32 %v250, 4294901760
    %v1426 = vsub.f32 %v250, %v1425
    %v1427 = vand.u32 %v1426, 4294901760
    %1428 = vmatpush1.xpose.msra.mxu0 %v1427
    %1429 = vmatprep.subr.mxu0 0.0
    %v1430 = vand.u32 %v253, 4294901760
    %v1431 = vsub.f32 %v253, %v1430
    %v1432 = vand.u32 %v1431, 4294901760
    %1433 = vmatpush1.xpose.msra.mxu0 %v1432
    %1434 = vmatprep.subr.mxu0 0.0
    %v1435 = vand.u32 %v256, 4294901760
    %v1436 = vsub.f32 %v256, %v1435
    %v1437 = vand.u32 %v1436, 4294901760
    %1438 = vmatpush1.xpose.msra.mxu0 %v1437
    %1439 = vmatprep.subr.mxu0 0.0
    %v1440 = vand.u32 %v259, 4294901760
    %v1441 = vsub.f32 %v259, %v1440
    %v1442 = vand.u32 %v1441, 4294901760
    %1443 = vmatpush1.xpose.msra.mxu0 %v1442
    %1444 = vmatprep.subr.mxu0 0.0
    %v1445 = vand.u32 %v262, 4294901760
    %v1446 = vsub.f32 %v262, %v1445
    %v1447 = vand.u32 %v1446, 4294901760
    %1448 = vmatpush1.xpose.msra.mxu0 %v1447
    %1449 = vmatprep.subr.mxu0 0.0
    %v1450 = vand.u32 %v265, 4294901760
    %v1451 = vsub.f32 %v265, %v1450
    %v1452 = vand.u32 %v1451, 4294901760
    %1453 = vmatpush1.xpose.msra.mxu0 %v1452
    %1454 = vmatprep.subr.mxu0 0.0
    %v1455 = vand.u32 %v268, 4294901760
    %v1456 = vsub.f32 %v268, %v1455
    %v1457 = vand.u32 %v1456, 4294901760
    %1458 = vmatpush1.xpose.msra.mxu0 %v1457
    %1459 = vmatprep.subr.mxu0 0.0
    %v1460 = vand.u32 %v271, 4294901760
    %v1461 = vsub.f32 %v271, %v1460
    %v1462 = vand.u32 %v1461, 4294901760
    %1463 = vmatpush1.xpose.msra.mxu0 %v1462
    %1464 = vmatprep.subr.mxu0 0.0
    %v1465 = vand.u32 %v274, 4294901760
    %v1466 = vsub.f32 %v274, %v1465
    %v1467 = vand.u32 %v1466, 4294901760
    %1468 = vmatpush1.xpose.msra.mxu0 %v1467
    %1469 = vmatprep.subr.mxu0 0.0
    %v1470 = vand.u32 %v277, 4294901760
    %v1471 = vsub.f32 %v277, %v1470
    %v1472 = vand.u32 %v1471, 4294901760
    %1473 = vmatpush1.xpose.msra.mxu0 %v1472
    %1474 = vmatprep.subr.mxu0 0.0
    %v1475 = vand.u32 %v280, 4294901760
    %v1476 = vsub.f32 %v280, %v1475
    %v1477 = vand.u32 %v1476, 4294901760
    %1478 = vmatpush1.xpose.msra.mxu0 %v1477
    %1479 = vmatprep.subr.mxu0 0.0
    %v1480 = vand.u32 %v283, 4294901760
    %v1481 = vsub.f32 %v283, %v1480
    %v1482 = vand.u32 %v1481, 4294901760
    %1483 = vmatpush1.xpose.msra.mxu0 %v1482
    %1484 = vmatprep.subr.mxu0 0.0
    %v1485 = vand.u32 %v286, 4294901760
    %v1486 = vsub.f32 %v286, %v1485
    %v1487 = vand.u32 %v1486, 4294901760
    %1488 = vmatpush1.xpose.msra.mxu0 %v1487
    %1489 = vmatprep.subr.mxu0 0.0
    %v1490 = vand.u32 %v289, 4294901760
    %v1491 = vsub.f32 %v289, %v1490
    %v1492 = vand.u32 %v1491, 4294901760
    %1493 = vmatpush1.xpose.msra.mxu0 %v1492
    %1494 = vmatprep.subr.mxu0 0.0
    %v1495 = vand.u32 %v292, 4294901760
    %v1496 = vsub.f32 %v292, %v1495
    %v1497 = vand.u32 %v1496, 4294901760
    %1498 = vmatpush1.xpose.msra.mxu0 %v1497
    %1499 = vmatprep.subr.mxu0 0.0
    %v1500 = vand.u32 %v295, 4294901760
    %v1501 = vsub.f32 %v295, %v1500
    %v1502 = vand.u32 %v1501, 4294901760
    %1503 = vmatpush1.xpose.msra.mxu0 %v1502
    %1504 = vmatprep.subr.mxu0 0.0
    %v1505 = vand.u32 %v298, 4294901760
    %v1506 = vsub.f32 %v298, %v1505
    %v1507 = vand.u32 %v1506, 4294901760
    %1508 = vmatpush1.xpose.msra.mxu0 %v1507
    %1509 = vmatprep.subr.mxu0 0.0
    %v1510 = vand.u32 %v301, 4294901760
    %v1511 = vsub.f32 %v301, %v1510
    %v1512 = vand.u32 %v1511, 4294901760
    %1513 = vmatpush1.xpose.msra.mxu0 %v1512
    %1514 = vmatprep.subr.mxu0 0.0
    %v1515 = vand.u32 %v304, 4294901760
    %v1516 = vsub.f32 %v304, %v1515
    %v1517 = vand.u32 %v1516, 4294901760
    %1518 = vmatpush1.xpose.msra.mxu0 %v1517
    %1519 = vmatprep.subr.mxu0 0.0
    %v1520 = vand.u32 %v307, 4294901760
    %v1521 = vsub.f32 %v307, %v1520
    %v1522 = vand.u32 %v1521, 4294901760
    %1523 = vmatpush1.xpose.msra.mxu0 %v1522
    %1524 = vmatprep.subr.mxu0 0.0
    %v1525 = vand.u32 %v310, 4294901760
    %v1526 = vsub.f32 %v310, %v1525
    %v1527 = vand.u32 %v1526, 4294901760
    %1528 = vmatpush1.xpose.msra.mxu0 %v1527
    %1529 = vmatprep.subr.mxu0 0.0
    %v1530 = vand.u32 %v313, 4294901760
    %v1531 = vsub.f32 %v313, %v1530
    %v1532 = vand.u32 %v1531, 4294901760
    %1533 = vmatpush1.xpose.msra.mxu0 %v1532
    %1534 = vmatprep.subr.mxu0 0.0
    %v1535 = vand.u32 %v316, 4294901760
    %v1536 = vsub.f32 %v316, %v1535
    %v1537 = vand.u32 %v1536, 4294901760
    %1538 = vmatpush1.xpose.msra.mxu0 %v1537
    %1539 = vmatprep.subr.mxu0 0.0
    %v1540 = vand.u32 %v319, 4294901760
    %v1541 = vsub.f32 %v319, %v1540
    %v1542 = vand.u32 %v1541, 4294901760
    %1543 = vmatpush1.xpose.msra.mxu0 %v1542
    %1544 = vmatprep.subr.mxu0 0.0
    %v1545 = vand.u32 %v322, 4294901760
    %v1546 = vsub.f32 %v322, %v1545
    %v1547 = vand.u32 %v1546, 4294901760
    %1548 = vmatpush1.xpose.msra.mxu0 %v1547
    %1549 = vmatprep.subr.mxu0 0.0
    %v1550 = vand.u32 %v325, 4294901760
    %v1551 = vsub.f32 %v325, %v1550
    %v1552 = vand.u32 %v1551, 4294901760
    %1553 = vmatpush1.xpose.msra.mxu0 %v1552
    %1554 = vmatprep.subr.mxu0 0.0
    %v1555 = vand.u32 %v328, 4294901760
    %v1556 = vsub.f32 %v328, %v1555
    %v1557 = vand.u32 %v1556, 4294901760
    %1558 = vmatpush1.xpose.msra.mxu0 %v1557
    %1559 = vmatprep.subr.mxu0 0.0
    %v1560 = vand.u32 %v331, 4294901760
    %v1561 = vsub.f32 %v331, %v1560
    %v1562 = vand.u32 %v1561, 4294901760
    %1563 = vmatpush1.xpose.msra.mxu0 %v1562
    %1564 = vmatprep.subr.mxu0 0.0
    %v1565 = vand.u32 %v334, 4294901760
    %v1566 = vsub.f32 %v334, %v1565
    %v1567 = vand.u32 %v1566, 4294901760
    %1568 = vmatpush1.xpose.msra.mxu0 %v1567
    %1569 = vmatprep.mubr.f32.mxu0 0.0
    %v1570 = vand.u32 %v196, 4294901760
    %1571 = vmatmul.mubr.f32.gmra.mrb[0].mxu0 %v1570
    %v1572 = vpop.f32.mrb[0].mxu0
    %v1573 = vadd.f32 %v1279, %v1572
    %v1574 = vpop.f32.mrb[0].mxu0
    %v1575 = vadd.f32 %v1281, %v1574
    %1576 = vmatprep.mubr.f32.mxu0 0.0
    %v1577 = vand.u32 %v199, 4294901760
    %1578 = vmatmul.mubr.f32.gmra.mrb[0].mxu0 %v1577
    %v1579 = vpop.f32.mrb[0].mxu0
    %v1580 = vadd.f32 %v1288, %v1579
    %v1581 = vpop.f32.mrb[0].mxu0
    %v1582 = vadd.f32 %v1290, %v1581
    %1583 = vmatprep.mubr.f32.mxu0 0.0
    %v1584 = vand.u32 %v202, 4294901760
    %1585 = vmatmul.mubr.f32.gmra.mrb[0].mxu0 %v1584
    %v1586 = vpop.f32.mrb[0].mxu0
    %v1587 = vadd.f32 %v1297, %v1586
    %v1588 = vpop.f32.mrb[0].mxu0
    %v1589 = vadd.f32 %v1299, %v1588
    %1590 = vmatprep.mubr.f32.mxu0 0.0
    %v1591 = vand.u32 %v205, 4294901760
    %1592 = vmatmul.mubr.f32.gmra.mrb[0].mxu0 %v1591
    %v1593 = vpop.f32.mrb[0].mxu0
    %v1594 = vadd.f32 %v1306, %v1593
    %v1595 = vpop.f32.mrb[0].mxu0
    %v1596 = vadd.f32 %v1308, %v1595
    %1597 = vmatprep.mubr.f32.mxu0 0.0
    %v1598 = vand.u32 %v208, 4294901760
    %1599 = vmatmul.mubr.f32.gmra.mrb[0].mxu0 %v1598
    %v1600 = vpop.f32.mrb[0].mxu0
    %v1601 = vadd.f32 %v1315, %v1600
    %v1602 = vpop.f32.mrb[0].mxu0
    %v1603 = vadd.f32 %v1317, %v1602
    %1604 = vmatprep.mubr.f32.mxu0 0.0
    %v1605 = vand.u32 %v211, 4294901760
    %1606 = vmatmul.mubr.f32.gmra.mrb[0].mxu0 %v1605
    %v1607 = vpop.f32.mrb[0].mxu0
    %v1608 = vadd.f32 %v1324, %v1607
    %v1609 = vpop.f32.mrb[0].mxu0
    %v1610 = vadd.f32 %v1326, %v1609
    %1611 = vmatprep.mubr.f32.mxu0 0.0
    %v1612 = vand.u32 %v214, 4294901760
    %1613 = vmatmul.mubr.f32.gmra.mrb[0].mxu0 %v1612
    %v1614 = vpop.f32.mrb[0].mxu0
    %v1615 = vadd.f32 %v1333, %v1614
    %v1616 = vpop.f32.mrb[0].mxu0
    %v1617 = vadd.f32 %v1335, %v1616
    %1618 = vmatprep.mubr.f32.mxu0 0.0
    %v1619 = vand.u32 %v217, 4294901760
    %1620 = vmatmul.mubr.f32.gmra.mrb[0].mxu0 %v1619
    %v1621 = vpop.f32.mrb[0].mxu0
    %v1622 = vadd.f32 %v1342, %v1621
    %v1623 = vpop.f32.mrb[0].mxu0
    %v1624 = vadd.f32 %v1344, %v1623
    %1625 = vmatprep.mubr.f32.mxu0 0.0
    %v1626 = vand.u32 %v220, 4294901760
    %1627 = vmatmul.mubr.f32.gmra.mrb[0].mxu0 %v1626
    %v1628 = vpop.f32.mrb[0].mxu0
    %v1629 = vadd.f32 %v1351, %v1628
    %v1630 = vpop.f32.mrb[0].mxu0
    %v1631 = vadd.f32 %v1353, %v1630
    %1632 = vmatprep.mubr.f32.mxu0 0.0
    %v1633 = vand.u32 %v223, 4294901760
    %1634 = vmatmul.mubr.f32.gmra.mrb[0].mxu0 %v1633
    %v1635 = vpop.f32.mrb[0].mxu0
    %v1636 = vadd.f32 %v1360, %v1635
    %v1637 = vpop.f32.mrb[0].mxu0
    %v1638 = vadd.f32 %v1362, %v1637
    %1639 = vmatprep.mubr.f32.mxu0 0.0
    %v1640 = vand.u32 %v226, 4294901760
    %1641 = vmatmul.mubr.f32.gmra.mrb[0].mxu0 %v1640
    %v1642 = vpop.f32.mrb[0].mxu0
    %v1643 = vadd.f32 %v1369, %v1642
    %v1644 = vpop.f32.mrb[0].mxu0
    %v1645 = vadd.f32 %v1371, %v1644
    %1646 = vmatprep.mubr.f32.mxu0 0.0
    %v1647 = vand.u32 %v229, 4294901760
    %1648 = vmatmul.mubr.f32.gmra.mrb[0].mxu0 %v1647
    %v1649 = vpop.f32.mrb[0].mxu0
    %v1650 = vadd.f32 %v1378, %v1649
    %v1651 = vpop.f32.mrb[0].mxu0
    %v1652 = vadd.f32 %v1380, %v1651
    %1653 = vmatprep.mubr.f32.mxu0 0.0
    %v1654 = vand.u32 %v232, 4294901760
    %1655 = vmatmul.mubr.f32.gmra.mrb[0].mxu0 %v1654
    %v1656 = vpop.f32.mrb[0].mxu0
    %v1657 = vadd.f32 %v1387, %v1656
    %v1658 = vpop.f32.mrb[0].mxu0
    %v1659 = vadd.f32 %v1389, %v1658
    %1660 = vmatprep.mubr.f32.mxu0 0.0
    %v1661 = vand.u32 %v235, 4294901760
    %1662 = vmatmul.mubr.f32.gmra.mrb[0].mxu0 %v1661
    %v1663 = vpop.f32.mrb[0].mxu0
    %v1664 = vadd.f32 %v1396, %v1663
    %v1665 = vpop.f32.mrb[0].mxu0
    %v1666 = vadd.f32 %v1398, %v1665
    %1667 = vmatprep.mubr.f32.mxu0 0.0
    %v1668 = vand.u32 %v238, 4294901760
    %1669 = vmatmul.mubr.f32.gmra.mrb[0].mxu0 %v1668
    %v1670 = vpop.f32.mrb[0].mxu0
    %v1671 = vadd.f32 %v1405, %v1670
    %v1672 = vpop.f32.mrb[0].mxu0
    %v1673 = vadd.f32 %v1407, %v1672
    %1674 = vdwg.mxu0
    %1675 = vmatprep.subr.mxu0 0.0
    %v1676 = vand.u32 %v241, 4294901760
    %1677 = vmatpush1.xpose.msra.mxu0 %v1676
    %1678 = vmatprep.subr.mxu0 0.0
    %v1679 = vand.u32 %v244, 4294901760
    %1680 = vmatpush1.xpose.msra.mxu0 %v1679
    %1681 = vmatprep.subr.mxu0 0.0
    %v1682 = vand.u32 %v247, 4294901760
    %1683 = vmatpush1.xpose.msra.mxu0 %v1682
    %1684 = vmatprep.subr.mxu0 0.0
    %v1685 = vand.u32 %v250, 4294901760
    %1686 = vmatpush1.xpose.msra.mxu0 %v1685
    %1687 = vmatprep.subr.mxu0 0.0
    %v1688 = vand.u32 %v253, 4294901760
    %1689 = vmatpush1.xpose.msra.mxu0 %v1688
    %1690 = vmatprep.subr.mxu0 0.0
    %v1691 = vand.u32 %v256, 4294901760
    %1692 = vmatpush1.xpose.msra.mxu0 %v1691
    %1693 = vmatprep.subr.mxu0 0.0
    %v1694 = vand.u32 %v259, 4294901760
    %1695 = vmatpush1.xpose.msra.mxu0 %v1694
    %1696 = vmatprep.subr.mxu0 0.0
    %v1697 = vand.u32 %v262, 4294901760
    %1698 = vmatpush1.xpose.msra.mxu0 %v1697
    %1699 = vmatprep.subr.mxu0 0.0
    %v1700 = vand.u32 %v265, 4294901760
    %1701 = vmatpush1.xpose.msra.mxu0 %v1700
    %1702 = vmatprep.subr.mxu0 0.0
    %v1703 = vand.u32 %v268, 4294901760
    %1704 = vmatpush1.xpose.msra.mxu0 %v1703
    %1705 = vmatprep.subr.mxu0 0.0
    %v1706 = vand.u32 %v271, 4294901760
    %1707 = vmatpush1.xpose.msra.mxu0 %v1706
    %1708 = vmatprep.subr.mxu0 0.0
    %v1709 = vand.u32 %v274, 4294901760
    %1710 = vmatpush1.xpose.msra.mxu0 %v1709
    %1711 = vmatprep.subr.mxu0 0.0
    %v1712 = vand.u32 %v277, 4294901760
    %1713 = vmatpush1.xpose.msra.mxu0 %v1712
    %1714 = vmatprep.subr.mxu0 0.0
    %v1715 = vand.u32 %v280, 4294901760
    %1716 = vmatpush1.xpose.msra.mxu0 %v1715
    %1717 = vmatprep.subr.mxu0 0.0
    %v1718 = vand.u32 %v283, 4294901760
    %1719 = vmatpush1.xpose.msra.mxu0 %v1718
    %1720 = vmatprep.subr.mxu0 0.0
    %v1721 = vand.u32 %v286, 4294901760
    %1722 = vmatpush1.xpose.msra.mxu0 %v1721
    %1723 = vmatprep.subr.mxu0 0.0
    %v1724 = vand.u32 %v289, 4294901760
    %1725 = vmatpush1.xpose.msra.mxu0 %v1724
    %1726 = vmatprep.subr.mxu0 0.0
    %v1727 = vand.u32 %v292, 4294901760
    %1728 = vmatpush1.xpose.msra.mxu0 %v1727
    %1729 = vmatprep.subr.mxu0 0.0
    %v1730 = vand.u32 %v295, 4294901760
    %1731 = vmatpush1.xpose.msra.mxu0 %v1730
    %1732 = vmatprep.subr.mxu0 0.0
    %v1733 = vand.u32 %v298, 4294901760
    %1734 = vmatpush1.xpose.msra.mxu0 %v1733
    %1735 = vmatprep.subr.mxu0 0.0
    %v1736 = vand.u32 %v301, 4294901760
    %1737 = vmatpush1.xpose.msra.mxu0 %v1736
    %1738 = vmatprep.subr.mxu0 0.0
    %v1739 = vand.u32 %v304, 4294901760
    %1740 = vmatpush1.xpose.msra.mxu0 %v1739
    %1741 = vmatprep.subr.mxu0 0.0
    %v1742 = vand.u32 %v307, 4294901760
    %1743 = vmatpush1.xpose.msra.mxu0 %v1742
    %1744 = vmatprep.subr.mxu0 0.0
    %v1745 = vand.u32 %v310, 4294901760
    %1746 = vmatpush1.xpose.msra.mxu0 %v1745
    %1747 = vmatprep.subr.mxu0 0.0
    %v1748 = vand.u32 %v313, 4294901760
    %1749 = vmatpush1.xpose.msra.mxu0 %v1748
    %1750 = vmatprep.subr.mxu0 0.0
    %v1751 = vand.u32 %v316, 4294901760
    %1752 = vmatpush1.xpose.msra.mxu0 %v1751
    %1753 = vmatprep.subr.mxu0 0.0
    %v1754 = vand.u32 %v319, 4294901760
    %1755 = vmatpush1.xpose.msra.mxu0 %v1754
    %1756 = vmatprep.subr.mxu0 0.0
    %v1757 = vand.u32 %v322, 4294901760
    %1758 = vmatpush1.xpose.msra.mxu0 %v1757
    %1759 = vmatprep.subr.mxu0 0.0
    %v1760 = vand.u32 %v325, 4294901760
    %1761 = vmatpush1.xpose.msra.mxu0 %v1760
    %1762 = vmatprep.subr.mxu0 0.0
    %v1763 = vand.u32 %v328, 4294901760
    %1764 = vmatpush1.xpose.msra.mxu0 %v1763
    %1765 = vmatprep.subr.mxu0 0.0
    %v1766 = vand.u32 %v331, 4294901760
    %1767 = vmatpush1.xpose.msra.mxu0 %v1766
    %1768 = vmatprep.subr.mxu0 0.0
    %v1769 = vand.u32 %v334, 4294901760
    %1770 = vmatpush1.xpose.msra.mxu0 %v1769
    %1771 = vmatprep.mubr.f32.mxu0 0.0
    %v1772 = vand.u32 %v196, 4294901760
    %1773 = vmatmul.mubr.f32.gmra.mrb[0].mxu0 %v1772
    %v1774 = vpop.f32.mrb[0].mxu0
    %v1775 = vadd.f32 %v1573, %v1774
    %v1776 = vpop.f32.mrb[0].mxu0
    %v1777 = vadd.f32 %v1575, %v1776
    %1778 = vmatprep.mubr.f32.mxu0 0.0
    %v1779 = vand.u32 %v199, 4294901760
    %1780 = vmatmul.mubr.f32.gmra.mrb[0].mxu0 %v1779
    %v1781 = vpop.f32.mrb[0].mxu0
    %v1782 = vadd.f32 %v1580, %v1781
    %v1783 = vpop.f32.mrb[0].mxu0
    %v1784 = vadd.f32 %v1582, %v1783
    %1785 = vmatprep.mubr.f32.mxu0 0.0
    %v1786 = vand.u32 %v202, 4294901760
    %1787 = vmatmul.mubr.f32.gmra.mrb[0].mxu0 %v1786
    %v1788 = vpop.f32.mrb[0].mxu0
    %v1789 = vadd.f32 %v1587, %v1788
    %v1790 = vpop.f32.mrb[0].mxu0
    %v1791 = vadd.f32 %v1589, %v1790
    %1792 = vmatprep.mubr.f32.mxu0 0.0
    %v1793 = vand.u32 %v205, 4294901760
    %1794 = vmatmul.mubr.f32.gmra.mrb[0].mxu0 %v1793
    %v1795 = vpop.f32.mrb[0].mxu0
    %v1796 = vadd.f32 %v1594, %v1795
    %v1797 = vpop.f32.mrb[0].mxu0
    %v1798 = vadd.f32 %v1596, %v1797
    %1799 = vmatprep.mubr.f32.mxu0 0.0
    %v1800 = vand.u32 %v208, 4294901760
    %1801 = vmatmul.mubr.f32.gmra.mrb[0].mxu0 %v1800
    %v1802 = vpop.f32.mrb[0].mxu0
    %v1803 = vadd.f32 %v1601, %v1802
    %v1804 = vpop.f32.mrb[0].mxu0
    %v1805 = vadd.f32 %v1603, %v1804
    %1806 = vmatprep.mubr.f32.mxu0 0.0
    %v1807 = vand.u32 %v211, 4294901760
    %1808 = vmatmul.mubr.f32.gmra.mrb[0].mxu0 %v1807
    %v1809 = vpop.f32.mrb[0].mxu0
    %v1810 = vadd.f32 %v1608, %v1809
    %v1811 = vpop.f32.mrb[0].mxu0
    %v1812 = vadd.f32 %v1610, %v1811
    %1813 = vmatprep.mubr.f32.mxu0 0.0
    %v1814 = vand.u32 %v214, 4294901760
    %1815 = vmatmul.mubr.f32.gmra.mrb[0].mxu0 %v1814
    %v1816 = vpop.f32.mrb[0].mxu0
    %v1817 = vadd.f32 %v1615, %v1816
    %v1818 = vpop.f32.mrb[0].mxu0
    %v1819 = vadd.f32 %v1617, %v1818
    %1820 = vmatprep.mubr.f32.mxu0 0.0
    %v1821 = vand.u32 %v217, 4294901760
    %1822 = vmatmul.mubr.f32.gmra.mrb[0].mxu0 %v1821
    %v1823 = vpop.f32.mrb[0].mxu0
    %v1824 = vadd.f32 %v1622, %v1823
    %v1825 = vpop.f32.mrb[0].mxu0
    %v1826 = vadd.f32 %v1624, %v1825
    %1827 = vmatprep.mubr.f32.mxu0 0.0
    %v1828 = vand.u32 %v220, 4294901760
    %1829 = vmatmul.mubr.f32.gmra.mrb[0].mxu0 %v1828
    %v1830 = vpop.f32.mrb[0].mxu0
    %v1831 = vadd.f32 %v1629, %v1830
    %v1832 = vpop.f32.mrb[0].mxu0
    %v1833 = vadd.f32 %v1631, %v1832
    %1834 = vmatprep.mubr.f32.mxu0 0.0
    %v1835 = vand.u32 %v223, 4294901760
    %1836 = vmatmul.mubr.f32.gmra.mrb[0].mxu0 %v1835
    %v1837 = vpop.f32.mrb[0].mxu0
    %v1838 = vadd.f32 %v1636, %v1837
    %v1839 = vpop.f32.mrb[0].mxu0
    %v1840 = vadd.f32 %v1638, %v1839
    %1841 = vmatprep.mubr.f32.mxu0 0.0
    %v1842 = vand.u32 %v226, 4294901760
    %1843 = vmatmul.mubr.f32.gmra.mrb[0].mxu0 %v1842
    %v1844 = vpop.f32.mrb[0].mxu0
    %v1845 = vadd.f32 %v1643, %v1844
    %v1846 = vpop.f32.mrb[0].mxu0
    %v1847 = vadd.f32 %v1645, %v1846
    %1848 = vmatprep.mubr.f32.mxu0 0.0
    %v1849 = vand.u32 %v229, 4294901760
    %1850 = vmatmul.mubr.f32.gmra.mrb[0].mxu0 %v1849
    %v1851 = vpop.f32.mrb[0].mxu0
    %v1852 = vadd.f32 %v1650, %v1851
    %v1853 = vpop.f32.mrb[0].mxu0
    %v1854 = vadd.f32 %v1652, %v1853
    %1855 = vmatprep.mubr.f32.mxu0 0.0
    %v1856 = vand.u32 %v232, 4294901760
    %1857 = vmatmul.mubr.f32.gmra.mrb[0].mxu0 %v1856
    %v1858 = vpop.f32.mrb[0].mxu0
    %v1859 = vadd.f32 %v1657, %v1858
    %v1860 = vpop.f32.mrb[0].mxu0
    %v1861 = vadd.f32 %v1659, %v1860
    %1862 = vmatprep.mubr.f32.mxu0 0.0
    %v1863 = vand.u32 %v235, 4294901760
    %1864 = vmatmul.mubr.f32.gmra.mrb[0].mxu0 %v1863
    %v1865 = vpop.f32.mrb[0].mxu0
    %v1866 = vadd.f32 %v1664, %v1865
    %v1867 = vpop.f32.mrb[0].mxu0
    %v1868 = vadd.f32 %v1666, %v1867
    %1869 = vmatprep.mubr.f32.mxu0 0.0
    %v1870 = vand.u32 %v238, 4294901760
    %1871 = vmatmul.mubr.f32.gmra.mrb[0].mxu0 %v1870
    %v1872 = vpop.f32.mrb[0].mxu0
    %v1873 = vadd.f32 %v1671, %v1872
    %v1874 = vpop.f32.mrb[0].mxu0
    %v1875 = vadd.f32 %v1673, %v1874
    %1876 = vdwg.mxu0
    %vm1877 = vcmp.ge.f32.partialorder %v1775, 0.0
    %vm1878 = vcmp.ge.f32.partialorder %v1777, 0.0
    %vm1879 = vcmp.ge.f32.partialorder %v1782, 0.0
    %vm1880 = vcmp.ge.f32.partialorder %v1784, 0.0
    %vm1881 = vcmp.ge.f32.partialorder %v1789, 0.0
    %vm1882 = vcmp.ge.f32.partialorder %v1791, 0.0
    %vm1883 = vcmp.ge.f32.partialorder %v1796, 0.0
    %vm1884 = vcmp.ge.f32.partialorder %v1798, 0.0
    %vm1885 = vcmp.ge.f32.partialorder %v1803, 0.0
    %vm1886 = vcmp.ge.f32.partialorder %v1805, 0.0
    %vm1887 = vcmp.ge.f32.partialorder %v1810, 0.0
    %vm1888 = vcmp.ge.f32.partialorder %v1812, 0.0
    %vm1889 = vcmp.ge.f32.partialorder %v1817, 0.0
    %vm1890 = vcmp.ge.f32.partialorder %v1819, 0.0
    %vm1891 = vcmp.ge.f32.partialorder %v1824, 0.0
    %vm1892 = vcmp.ge.f32.partialorder %v1826, 0.0
    %vm1893 = vcmp.ge.f32.partialorder %v1831, 0.0
    %vm1894 = vcmp.ge.f32.partialorder %v1833, 0.0
    %vm1895 = vcmp.ge.f32.partialorder %v1838, 0.0
    %vm1896 = vcmp.ge.f32.partialorder %v1840, 0.0
    %vm1897 = vcmp.ge.f32.partialorder %v1845, 0.0
    %vm1898 = vcmp.ge.f32.partialorder %v1847, 0.0
    %vm1899 = vcmp.ge.f32.partialorder %v1852, 0.0
    %vm1900 = vcmp.ge.f32.partialorder %v1854, 0.0
    %vm1901 = vcmp.ge.f32.partialorder %v1859, 0.0
    %vm1902 = vcmp.ge.f32.partialorder %v1861, 0.0
    %vm1903 = vcmp.ge.f32.partialorder %v1866, 0.0
    %vm1904 = vcmp.ge.f32.partialorder %v1868, 0.0
    %vm1905 = vcmp.ge.f32.partialorder %v1873, 0.0
    %vm1906 = vcmp.ge.f32.partialorder %v1875, 0.0
    %v1907 = vmul.f32 %v1775, 0.01
    %v1908 = vmul.f32 %v1777, 0.01
    %v1909 = vmul.f32 %v1782, 0.01
    %v1910 = vmul.f32 %v1784, 0.01
    %v1911 = vmul.f32 %v1789, 0.01
    %v1912 = vmul.f32 %v1791, 0.01
    %v1913 = vmul.f32 %v1796, 0.01
    %v1914 = vmul.f32 %v1798, 0.01
    %v1915 = vmul.f32 %v1803, 0.01
    %v1916 = vmul.f32 %v1805, 0.01
    %v1917 = vmul.f32 %v1810, 0.01
    %v1918 = vmul.f32 %v1812, 0.01
    %v1919 = vmul.f32 %v1817, 0.01
    %v1920 = vmul.f32 %v1819, 0.01
    %v1921 = vmul.f32 %v1824, 0.01
    %v1922 = vmul.f32 %v1826, 0.01
    %v1923 = vmul.f32 %v1831, 0.01
    %v1924 = vmul.f32 %v1833, 0.01
    %v1925 = vmul.f32 %v1838, 0.01
    %v1926 = vmul.f32 %v1840, 0.01
    %v1927 = vmul.f32 %v1845, 0.01
    %v1928 = vmul.f32 %v1847, 0.01
    %v1929 = vmul.f32 %v1852, 0.01
    %v1930 = vmul.f32 %v1854, 0.01
    %v1931 = vmul.f32 %v1859, 0.01
    %v1932 = vmul.f32 %v1861, 0.01
    %v1933 = vmul.f32 %v1866, 0.01
    %v1934 = vmul.f32 %v1868, 0.01
    %v1935 = vmul.f32 %v1873, 0.01
    %v1936 = vmul.f32 %v1875, 0.01
    %v1937 = vsel %vm1877, %v1775, %v1907
    %v1938 = vsel %vm1878, %v1777, %v1908
    %v1939 = vsel %vm1879, %v1782, %v1909
    %v1940 = vsel %vm1880, %v1784, %v1910
    %v1941 = vsel %vm1881, %v1789, %v1911
    %v1942 = vsel %vm1882, %v1791, %v1912
    %v1943 = vsel %vm1883, %v1796, %v1913
    %v1944 = vsel %vm1884, %v1798, %v1914
    %v1945 = vsel %vm1885, %v1803, %v1915
    %v1946 = vsel %vm1886, %v1805, %v1916
    %v1947 = vsel %vm1887, %v1810, %v1917
    %v1948 = vsel %vm1888, %v1812, %v1918
    %v1949 = vsel %vm1889, %v1817, %v1919
    %v1950 = vsel %vm1890, %v1819, %v1920
    %v1951 = vsel %vm1891, %v1824, %v1921
    %v1952 = vsel %vm1892, %v1826, %v1922
    %v1953 = vsel %vm1893, %v1831, %v1923
    %v1954 = vsel %vm1894, %v1833, %v1924
    %v1955 = vsel %vm1895, %v1838, %v1925
    %v1956 = vsel %vm1896, %v1840, %v1926
    %v1957 = vsel %vm1897, %v1845, %v1927
    %v1958 = vsel %vm1898, %v1847, %v1928
    %v1959 = vsel %vm1899, %v1852, %v1929
    %v1960 = vsel %vm1900, %v1854, %v1930
    %v1961 = vsel %vm1901, %v1859, %v1931
    %v1962 = vsel %vm1902, %v1861, %v1932
    %v1963 = vsel %vm1903, %v1866, %v1933
    %v1964 = vsel %vm1904, %v1868, %v1934
    %v1965 = vsel %vm1905, %v1873, %v1935
    %v1966 = vsel %vm1906, %v1875, %v1936
    %v1967 = vld [vmem:[#allocation3] sm:$0xff]
    %v1968 = vld [vmem:[#allocation3 + $0x8] sm:$0xff]
    %v1969 = vld [vmem:[#allocation3 + $0x10] sm:$0xff]
    %v1970 = vld [vmem:[#allocation3 + $0x18] sm:$0xff]
    %v1971 = vld [vmem:[#allocation6] sm:$0xff]
    %v1972 = vld [vmem:[#allocation6 + $0x8] sm:$0xff]
    %v1973 = vld [vmem:[#allocation6 + $0x10] sm:$0xff]
    %v1974 = vld [vmem:[#allocation6 + $0x18] sm:$0xff]
    %1976 = vset.pattern.permute.xlu0 0
    %1977 = vperm.xlu0 %1976, %v1971
    %v1978 = vpop.permute.xlu0 %1977
    %1981 = vset.pattern.permute.xlu0 0
    %1982 = vperm.xlu0 %1981, %v1972
    %v1983 = vpop.permute.xlu0 %1982
    %1986 = vset.pattern.permute.xlu0 0
    %1987 = vperm.xlu0 %1986, %v1973
    %v1988 = vpop.permute.xlu0 %1987
    %1991 = vset.pattern.permute.xlu0 0
    %1992 = vperm.xlu0 %1991, %v1974
    %v1993 = vpop.permute.xlu0 %1992
    %vm1995 = vcmask 982016
    %v1997 = vsel %vm1995, %v1967, 0
    %v2000 = vsel %vm1995, %v1968, 0
    %v2003 = vsel %vm1995, %v1969, 0
    %v2006 = vsel %vm1995, %v1970, 0
    %v2008 = vand.u32 %v1938, 4294901760
    %2009 = vmatprep.subr.mxu0 %v2008
    %v2010 = vand.u32 %v1937, 4294901760
    %2011 = vmatpush1.msra.mxu0 %v2010
    %v2012 = vand.u32 %v1940, 4294901760
    %2013 = vmatprep.subr.mxu0 %v2012
    %v2014 = vand.u32 %v1939, 4294901760
    %2015 = vmatpush1.msra.mxu0 %v2014
    %v2016 = vand.u32 %v1942, 4294901760
    %2017 = vmatprep.subr.mxu0 %v2016
    %v2018 = vand.u32 %v1941, 4294901760
    %2019 = vmatpush1.msra.mxu0 %v2018
    %v2020 = vand.u32 %v1944, 4294901760
    %2021 = vmatprep.subr.mxu0 %v2020
    %v2022 = vand.u32 %v1943, 4294901760
    %2023 = vmatpush1.msra.mxu0 %v2022
    %v2024 = vand.u32 %v1946, 4294901760
    %2025 = vmatprep.subr.mxu0 %v2024
    %v2026 = vand.u32 %v1945, 4294901760
    %2027 = vmatpush1.msra.mxu0 %v2026
    %v2028 = vand.u32 %v1948, 4294901760
    %2029 = vmatprep.subr.mxu0 %v2028
    %v2030 = vand.u32 %v1947, 4294901760
    %2031 = vmatpush1.msra.mxu0 %v2030
    %v2032 = vand.u32 %v1950, 4294901760
    %2033 = vmatprep.subr.mxu0 %v2032
    %v2034 = vand.u32 %v1949, 4294901760
    %2035 = vmatpush1.msra.mxu0 %v2034
    %v2036 = vand.u32 %v1952, 4294901760
    %2037 = vmatprep.subr.mxu0 %v2036
    %v2038 = vand.u32 %v1951, 4294901760
    %2039 = vmatpush1.msra.mxu0 %v2038
    %v2040 = vand.u32 %v1954, 4294901760
    %2041 = vmatprep.subr.mxu0 %v2040
    %v2042 = vand.u32 %v1953, 4294901760
    %2043 = vmatpush1.msra.mxu0 %v2042
    %v2044 = vand.u32 %v1956, 4294901760
    %2045 = vmatprep.subr.mxu0 %v2044
    %v2046 = vand.u32 %v1955, 4294901760
    %2047 = vmatpush1.msra.mxu0 %v2046
    %v2048 = vand.u32 %v1958, 4294901760
    %2049 = vmatprep.subr.mxu0 %v2048
    %v2050 = vand.u32 %v1957, 4294901760
    %2051 = vmatpush1.msra.mxu0 %v2050
    %v2052 = vand.u32 %v1960, 4294901760
    %2053 = vmatprep.subr.mxu0 %v2052
    %v2054 = vand.u32 %v1959, 4294901760
    %2055 = vmatpush1.msra.mxu0 %v2054
    %v2056 = vand.u32 %v1962, 4294901760
    %2057 = vmatprep.subr.mxu0 %v2056
    %v2058 = vand.u32 %v1961, 4294901760
    %2059 = vmatpush1.msra.mxu0 %v2058
    %v2060 = vand.u32 %v1964, 4294901760
    %2061 = vmatprep.subr.mxu0 %v2060
    %v2062 = vand.u32 %v1963, 4294901760
    %2063 = vmatpush1.msra.mxu0 %v2062
    %v2064 = vand.u32 %v1966, 4294901760
    %2065 = vmatprep.subr.mxu0 %v2064
    %v2066 = vand.u32 %v1965, 4294901760
    %2067 = vmatpush1.msra.mxu0 %v2066
    %2068 = vmatprep.subr.mxu0 0.0
    %2069 = vmatpush1.msra.mxu0 0.0
    %2070 = vmatprep.subr.mxu0 0.0
    %2071 = vmatpush1.msra.mxu0 0.0
    %2072 = vmatprep.subr.mxu0 0.0
    %2073 = vmatpush1.msra.mxu0 0.0
    %2074 = vmatprep.subr.mxu0 0.0
    %2075 = vmatpush1.msra.mxu0 0.0
    %2076 = vmatprep.subr.mxu0 0.0
    %2077 = vmatpush1.msra.mxu0 0.0
    %2078 = vmatprep.subr.mxu0 0.0
    %2079 = vmatpush1.msra.mxu0 0.0
    %2080 = vmatprep.subr.mxu0 0.0
    %2081 = vmatpush1.msra.mxu0 0.0
    %2082 = vmatprep.subr.mxu0 0.0
    %2083 = vmatpush1.msra.mxu0 0.0
    %2084 = vmatprep.subr.mxu0 0.0
    %2085 = vmatpush1.msra.mxu0 0.0
    %2086 = vmatprep.subr.mxu0 0.0
    %2087 = vmatpush1.msra.mxu0 0.0
    %2088 = vmatprep.subr.mxu0 0.0
    %2089 = vmatpush1.msra.mxu0 0.0
    %2090 = vmatprep.subr.mxu0 0.0
    %2091 = vmatpush1.msra.mxu0 0.0
    %2092 = vmatprep.subr.mxu0 0.0
    %2093 = vmatpush1.msra.mxu0 0.0
    %2094 = vmatprep.subr.mxu0 0.0
    %2095 = vmatpush1.msra.mxu0 0.0
    %2096 = vmatprep.subr.mxu0 0.0
    %2097 = vmatpush1.msra.mxu0 0.0
    %2098 = vmatprep.subr.mxu0 0.0
    %2099 = vmatpush1.msra.mxu0 0.0
    %2100 = vmatprep.subr.mxu0 0.0
    %2101 = vmatpush1.msra.mxu0 0.0
    %2102 = vmatprep.mubr.f32.mxu0 0.0
    %v2103 = vand.u32 %v1997, 4294901760
    %v2104 = vsub.f32 %v1997, %v2103
    %v2105 = vand.u32 %v2104, 4294901760
    %v2106 = vsub.f32 %v2104, %v2105
    %v2107 = vand.u32 %v2106, 4294901760
    %2108 = vmatmul.mubr.f32.gmra.mrb[0].mxu0 %v2107
    %v2109 = vpop.f32.mrb[0].mxu0
    %v2110 = vadd.f32 %v1978, %v2109
    %v2111 = vpop.f32.mrb[0].mxu0
    %v2112 = vadd.f32 %v1978, %v2111
    %2113 = vmatprep.mubr.f32.mxu0 0.0
    %v2114 = vand.u32 %v2000, 4294901760
    %v2115 = vsub.f32 %v2000, %v2114
    %v2116 = vand.u32 %v2115, 4294901760
    %v2117 = vsub.f32 %v2115, %v2116
    %v2118 = vand.u32 %v2117, 4294901760
    %2119 = vmatmul.mubr.f32.gmra.mrb[0].mxu0 %v2118
    %v2120 = vpop.f32.mrb[0].mxu0
    %v2121 = vadd.f32 %v1983, %v2120
    %v2122 = vpop.f32.mrb[0].mxu0
    %v2123 = vadd.f32 %v1983, %v2122
    %2124 = vmatprep.mubr.f32.mxu0 0.0
    %v2125 = vand.u32 %v2003, 4294901760
    %v2126 = vsub.f32 %v2003, %v2125
    %v2127 = vand.u32 %v2126, 4294901760
    %v2128 = vsub.f32 %v2126, %v2127
    %v2129 = vand.u32 %v2128, 4294901760
    %2130 = vmatmul.mubr.f32.gmra.mrb[0].mxu0 %v2129
    %v2131 = vpop.f32.mrb[0].mxu0
    %v2132 = vadd.f32 %v1988, %v2131
    %v2133 = vpop.f32.mrb[0].mxu0
    %v2134 = vadd.f32 %v1988, %v2133
    %2135 = vmatprep.mubr.f32.mxu0 0.0
    %v2136 = vand.u32 %v2006, 4294901760
    %v2137 = vsub.f32 %v2006, %v2136
    %v2138 = vand.u32 %v2137, 4294901760
    %v2139 = vsub.f32 %v2137, %v2138
    %v2140 = vand.u32 %v2139, 4294901760
    %2141 = vmatmul.mubr.f32.gmra.mrb[0].mxu0 %v2140
    %v2142 = vpop.f32.mrb[0].mxu0
    %v2143 = vadd.f32 %v1993, %v2142
    %v2144 = vpop.f32.mrb[0].mxu0
    %v2145 = vadd.f32 %v1993, %v2144
    %2146 = vdwg.mxu0
    %v2147 = vand.u32 %v1938, 4294901760
    %v2148 = vsub.f32 %v1938, %v2147
    %v2149 = vand.u32 %v2148, 4294901760
    %v2150 = vsub.f32 %v2148, %v2149
    %v2151 = vand.u32 %v2150, 4294901760
    %2152 = vmatprep.subr.mxu0 %v2151
    %v2153 = vand.u32 %v1937, 4294901760
    %v2154 = vsub.f32 %v1937, %v2153
    %v2155 = vand.u32 %v2154, 4294901760
    %v2156 = vsub.f32 %v2154, %v2155
    %v2157 = vand.u32 %v2156, 4294901760
    %2158 = vmatpush1.msra.mxu0 %v2157
    %v2159 = vand.u32 %v1940, 4294901760
    %v2160 = vsub.f32 %v1940, %v2159
    %v2161 = vand.u32 %v2160, 4294901760
    %v2162 = vsub.f32 %v2160, %v2161
    %v2163 = vand.u32 %v2162, 4294901760
    %2164 = vmatprep.subr.mxu0 %v2163
    %v2165 = vand.u32 %v1939, 4294901760
    %v2166 = vsub.f32 %v1939, %v2165
    %v2167 = vand.u32 %v2166, 4294901760
    %v2168 = vsub.f32 %v2166, %v2167
    %v2169 = vand.u32 %v2168, 4294901760
    %2170 = vmatpush1.msra.mxu0 %v2169
    %v2171 = vand.u32 %v1942, 4294901760
    %v2172 = vsub.f32 %v1942, %v2171
    %v2173 = vand.u32 %v2172, 4294901760
    %v2174 = vsub.f32 %v2172, %v2173
    %v2175 = vand.u32 %v2174, 4294901760
    %2176 = vmatprep.subr.mxu0 %v2175
    %v2177 = vand.u32 %v1941, 4294901760
    %v2178 = vsub.f32 %v1941, %v2177
    %v2179 = vand.u32 %v2178, 4294901760
    %v2180 = vsub.f32 %v2178, %v2179
    %v2181 = vand.u32 %v2180, 4294901760
    %2182 = vmatpush1.msra.mxu0 %v2181
    %v2183 = vand.u32 %v1944, 4294901760
    %v2184 = vsub.f32 %v1944, %v2183
    %v2185 = vand.u32 %v2184, 4294901760
    %v2186 = vsub.f32 %v2184, %v2185
    %v2187 = vand.u32 %v2186, 4294901760
    %2188 = vmatprep.subr.mxu0 %v2187
    %v2189 = vand.u32 %v1943, 4294901760
    %v2190 = vsub.f32 %v1943, %v2189
    %v2191 = vand.u32 %v2190, 4294901760
    %v2192 = vsub.f32 %v2190, %v2191
    %v2193 = vand.u32 %v2192, 4294901760
    %2194 = vmatpush1.msra.mxu0 %v2193
    %v2195 = vand.u32 %v1946, 4294901760
    %v2196 = vsub.f32 %v1946, %v2195
    %v2197 = vand.u32 %v2196, 4294901760
    %v2198 = vsub.f32 %v2196, %v2197
    %v2199 = vand.u32 %v2198, 4294901760
    %2200 = vmatprep.subr.mxu0 %v2199
    %v2201 = vand.u32 %v1945, 4294901760
    %v2202 = vsub.f32 %v1945, %v2201
    %v2203 = vand.u32 %v2202, 4294901760
    %v2204 = vsub.f32 %v2202, %v2203
    %v2205 = vand.u32 %v2204, 4294901760
    %2206 = vmatpush1.msra.mxu0 %v2205
    %v2207 = vand.u32 %v1948, 4294901760
    %v2208 = vsub.f32 %v1948, %v2207
    %v2209 = vand.u32 %v2208, 4294901760
    %v2210 = vsub.f32 %v2208, %v2209
    %v2211 = vand.u32 %v2210, 4294901760
    %2212 = vmatprep.subr.mxu0 %v2211
    %v2213 = vand.u32 %v1947, 4294901760
    %v2214 = vsub.f32 %v1947, %v2213
    %v2215 = vand.u32 %v2214, 4294901760
    %v2216 = vsub.f32 %v2214, %v2215
    %v2217 = vand.u32 %v2216, 4294901760
    %2218 = vmatpush1.msra.mxu0 %v2217
    %v2219 = vand.u32 %v1950, 4294901760
    %v2220 = vsub.f32 %v1950, %v2219
    %v2221 = vand.u32 %v2220, 4294901760
    %v2222 = vsub.f32 %v2220, %v2221
    %v2223 = vand.u32 %v2222, 4294901760
    %2224 = vmatprep.subr.mxu0 %v2223
    %v2225 = vand.u32 %v1949, 4294901760
    %v2226 = vsub.f32 %v1949, %v2225
    %v2227 = vand.u32 %v2226, 4294901760
    %v2228 = vsub.f32 %v2226, %v2227
    %v2229 = vand.u32 %v2228, 4294901760
    %2230 = vmatpush1.msra.mxu0 %v2229
    %v2231 = vand.u32 %v1952, 4294901760
    %v2232 = vsub.f32 %v1952, %v2231
    %v2233 = vand.u32 %v2232, 4294901760
    %v2234 = vsub.f32 %v2232, %v2233
    %v2235 = vand.u32 %v2234, 4294901760
    %2236 = vmatprep.subr.mxu0 %v2235
    %v2237 = vand.u32 %v1951, 4294901760
    %v2238 = vsub.f32 %v1951, %v2237
    %v2239 = vand.u32 %v2238, 4294901760
    %v2240 = vsub.f32 %v2238, %v2239
    %v2241 = vand.u32 %v2240, 4294901760
    %2242 = vmatpush1.msra.mxu0 %v2241
    %v2243 = vand.u32 %v1954, 4294901760
    %v2244 = vsub.f32 %v1954, %v2243
    %v2245 = vand.u32 %v2244, 4294901760
    %v2246 = vsub.f32 %v2244, %v2245
    %v2247 = vand.u32 %v2246, 4294901760
    %2248 = vmatprep.subr.mxu0 %v2247
    %v2249 = vand.u32 %v1953, 4294901760
    %v2250 = vsub.f32 %v1953, %v2249
    %v2251 = vand.u32 %v2250, 4294901760
    %v2252 = vsub.f32 %v2250, %v2251
    %v2253 = vand.u32 %v2252, 4294901760
    %2254 = vmatpush1.msra.mxu0 %v2253
    %v2255 = vand.u32 %v1956, 4294901760
    %v2256 = vsub.f32 %v1956, %v2255
    %v2257 = vand.u32 %v2256, 4294901760
    %v2258 = vsub.f32 %v2256, %v2257
    %v2259 = vand.u32 %v2258, 4294901760
    %2260 = vmatprep.subr.mxu0 %v2259
    %v2261 = vand.u32 %v1955, 4294901760
    %v2262 = vsub.f32 %v1955, %v2261
    %v2263 = vand.u32 %v2262, 4294901760
    %v2264 = vsub.f32 %v2262, %v2263
    %v2265 = vand.u32 %v2264, 4294901760
    %2266 = vmatpush1.msra.mxu0 %v2265
    %v2267 = vand.u32 %v1958, 4294901760
    %v2268 = vsub.f32 %v1958, %v2267
    %v2269 = vand.u32 %v2268, 4294901760
    %v2270 = vsub.f32 %v2268, %v2269
    %v2271 = vand.u32 %v2270, 4294901760
    %2272 = vmatprep.subr.mxu0 %v2271
    %v2273 = vand.u32 %v1957, 4294901760
    %v2274 = vsub.f32 %v1957, %v2273
    %v2275 = vand.u32 %v2274, 4294901760
    %v2276 = vsub.f32 %v2274, %v2275
    %v2277 = vand.u32 %v2276, 4294901760
    %2278 = vmatpush1.msra.mxu0 %v2277
    %v2279 = vand.u32 %v1960, 4294901760
    %v2280 = vsub.f32 %v1960, %v2279
    %v2281 = vand.u32 %v2280, 4294901760
    %v2282 = vsub.f32 %v2280, %v2281
    %v2283 = vand.u32 %v2282, 4294901760
    %2284 = vmatprep.subr.mxu0 %v2283
    %v2285 = vand.u32 %v1959, 4294901760
    %v2286 = vsub.f32 %v1959, %v2285
    %v2287 = vand.u32 %v2286, 4294901760
    %v2288 = vsub.f32 %v2286, %v2287
    %v2289 = vand.u32 %v2288, 4294901760
    %2290 = vmatpush1.msra.mxu0 %v2289
    %v2291 = vand.u32 %v1962, 4294901760
    %v2292 = vsub.f32 %v1962, %v2291
    %v2293 = vand.u32 %v2292, 4294901760
    %v2294 = vsub.f32 %v2292, %v2293
    %v2295 = vand.u32 %v2294, 4294901760
    %2296 = vmatprep.subr.mxu0 %v2295
    %v2297 = vand.u32 %v1961, 4294901760
    %v2298 = vsub.f32 %v1961, %v2297
    %v2299 = vand.u32 %v2298, 4294901760
    %v2300 = vsub.f32 %v2298, %v2299
    %v2301 = vand.u32 %v2300, 4294901760
    %2302 = vmatpush1.msra.mxu0 %v2301
    %v2303 = vand.u32 %v1964, 4294901760
    %v2304 = vsub.f32 %v1964, %v2303
    %v2305 = vand.u32 %v2304, 4294901760
    %v2306 = vsub.f32 %v2304, %v2305
    %v2307 = vand.u32 %v2306, 4294901760
    %2308 = vmatprep.subr.mxu0 %v2307
    %v2309 = vand.u32 %v1963, 4294901760
    %v2310 = vsub.f32 %v1963, %v2309
    %v2311 = vand.u32 %v2310, 4294901760
    %v2312 = vsub.f32 %v2310, %v2311
    %v2313 = vand.u32 %v2312, 4294901760
    %2314 = vmatpush1.msra.mxu0 %v2313
    %v2315 = vand.u32 %v1966, 4294901760
    %v2316 = vsub.f32 %v1966, %v2315
    %v2317 = vand.u32 %v2316, 4294901760
    %v2318 = vsub.f32 %v2316, %v2317
    %v2319 = vand.u32 %v2318, 4294901760
    %2320 = vmatprep.subr.mxu0 %v2319
    %v2321 = vand.u32 %v1965, 4294901760
    %v2322 = vsub.f32 %v1965, %v2321
    %v2323 = vand.u32 %v2322, 4294901760
    %v2324 = vsub.f32 %v2322, %v2323
    %v2325 = vand.u32 %v2324, 4294901760
    %2326 = vmatpush1.msra.mxu0 %v2325
    %2327 = vmatprep.subr.mxu0 0.0
    %2328 = vmatpush1.msra.mxu0 0.0
    %2329 = vmatprep.subr.mxu0 0.0
    %2330 = vmatpush1.msra.mxu0 0.0
    %2331 = vmatprep.subr.mxu0 0.0
    %2332 = vmatpush1.msra.mxu0 0.0
    %2333 = vmatprep.subr.mxu0 0.0
    %2334 = vmatpush1.msra.mxu0 0.0
    %2335 = vmatprep.subr.mxu0 0.0
    %2336 = vmatpush1.msra.mxu0 0.0
    %2337 = vmatprep.subr.mxu0 0.0
    %2338 = vmatpush1.msra.mxu0 0.0
    %2339 = vmatprep.subr.mxu0 0.0
    %2340 = vmatpush1.msra.mxu0 0.0
    %2341 = vmatprep.subr.mxu0 0.0
    %2342 = vmatpush1.msra.mxu0 0.0
    %2343 = vmatprep.subr.mxu0 0.0
    %2344 = vmatpush1.msra.mxu0 0.0
    %2345 = vmatprep.subr.mxu0 0.0
    %2346 = vmatpush1.msra.mxu0 0.0
    %2347 = vmatprep.subr.mxu0 0.0
    %2348 = vmatpush1.msra.mxu0 0.0
    %2349 = vmatprep.subr.mxu0 0.0
    %2350 = vmatpush1.msra.mxu0 0.0
    %2351 = vmatprep.subr.mxu0 0.0
    %2352 = vmatpush1.msra.mxu0 0.0
    %2353 = vmatprep.subr.mxu0 0.0
    %2354 = vmatpush1.msra.mxu0 0.0
    %2355 = vmatprep.subr.mxu0 0.0
    %2356 = vmatpush1.msra.mxu0 0.0
    %2357 = vmatprep.subr.mxu0 0.0
    %2358 = vmatpush1.msra.mxu0 0.0
    %2359 = vmatprep.subr.mxu0 0.0
    %2360 = vmatpush1.msra.mxu0 0.0
    %2361 = vmatprep.mubr.f32.mxu0 0.0
    %v2362 = vand.u32 %v1997, 4294901760
    %2363 = vmatmul.mubr.f32.gmra.mrb[0].mxu0 %v2362
    %v2364 = vpop.f32.mrb[0].mxu0
    %v2365 = vadd.f32 %v2110, %v2364
    %v2366 = vpop.f32.mrb[0].mxu0
    %v2367 = vadd.f32 %v2112, %v2366
    %2368 = vmatprep.mubr.f32.mxu0 0.0
    %v2369 = vand.u32 %v2000, 4294901760
    %2370 = vmatmul.mubr.f32.gmra.mrb[0].mxu0 %v2369
    %v2371 = vpop.f32.mrb[0].mxu0
    %v2372 = vadd.f32 %v2121, %v2371
    %v2373 = vpop.f32.mrb[0].mxu0
    %v2374 = vadd.f32 %v2123, %v2373
    %2375 = vmatprep.mubr.f32.mxu0 0.0
    %v2376 = vand.u32 %v2003, 4294901760
    %2377 = vmatmul.mubr.f32.gmra.mrb[0].mxu0 %v2376
    %v2378 = vpop.f32.mrb[0].mxu0
    %v2379 = vadd.f32 %v2132, %v2378
    %v2380 = vpop.f32.mrb[0].mxu0
    %v2381 = vadd.f32 %v2134, %v2380
    %2382 = vmatprep.mubr.f32.mxu0 0.0
    %v2383 = vand.u32 %v2006, 4294901760
    %2384 = vmatmul.mubr.f32.gmra.mrb[0].mxu0 %v2383
    %v2385 = vpop.f32.mrb[0].mxu0
    %v2386 = vadd.f32 %v2143, %v2385
    %v2387 = vpop.f32.mrb[0].mxu0
    %v2388 = vadd.f32 %v2145, %v2387
    %2389 = vdwg.mxu0
    %v2390 = vand.u32 %v1938, 4294901760
    %v2391 = vsub.f32 %v1938, %v2390
    %2392 = vmatprep.subr.mxu0 %v2391
    %v2393 = vand.u32 %v1937, 4294901760
    %v2394 = vsub.f32 %v1937, %v2393
    %2395 = vmatpush1.msra.mxu0 %v2394
    %v2396 = vand.u32 %v1940, 4294901760
    %v2397 = vsub.f32 %v1940, %v2396
    %2398 = vmatprep.subr.mxu0 %v2397
    %v2399 = vand.u32 %v1939, 4294901760
    %v2400 = vsub.f32 %v1939, %v2399
    %2401 = vmatpush1.msra.mxu0 %v2400
    %v2402 = vand.u32 %v1942, 4294901760
    %v2403 = vsub.f32 %v1942, %v2402
    %2404 = vmatprep.subr.mxu0 %v2403
    %v2405 = vand.u32 %v1941, 4294901760
    %v2406 = vsub.f32 %v1941, %v2405
    %2407 = vmatpush1.msra.mxu0 %v2406
    %v2408 = vand.u32 %v1944, 4294901760
    %v2409 = vsub.f32 %v1944, %v2408
    %2410 = vmatprep.subr.mxu0 %v2409
    %v2411 = vand.u32 %v1943, 4294901760
    %v2412 = vsub.f32 %v1943, %v2411
    %2413 = vmatpush1.msra.mxu0 %v2412
    %v2414 = vand.u32 %v1946, 4294901760
    %v2415 = vsub.f32 %v1946, %v2414
    %2416 = vmatprep.subr.mxu0 %v2415
    %v2417 = vand.u32 %v1945, 4294901760
    %v2418 = vsub.f32 %v1945, %v2417
    %2419 = vmatpush1.msra.mxu0 %v2418
    %v2420 = vand.u32 %v1948, 4294901760
    %v2421 = vsub.f32 %v1948, %v2420
    %2422 = vmatprep.subr.mxu0 %v2421
    %v2423 = vand.u32 %v1947, 4294901760
    %v2424 = vsub.f32 %v1947, %v2423
    %2425 = vmatpush1.msra.mxu0 %v2424
    %v2426 = vand.u32 %v1950, 4294901760
    %v2427 = vsub.f32 %v1950, %v2426
    %2428 = vmatprep.subr.mxu0 %v2427
    %v2429 = vand.u32 %v1949, 4294901760
    %v2430 = vsub.f32 %v1949, %v2429
    %2431 = vmatpush1.msra.mxu0 %v2430
    %v2432 = vand.u32 %v1952, 4294901760
    %v2433 = vsub.f32 %v1952, %v2432
    %2434 = vmatprep.subr.mxu0 %v2433
    %v2435 = vand.u32 %v1951, 4294901760
    %v2436 = vsub.f32 %v1951, %v2435
    %2437 = vmatpush1.msra.mxu0 %v2436
    %v2438 = vand.u32 %v1954, 4294901760
    %v2439 = vsub.f32 %v1954, %v2438
    %2440 = vmatprep.subr.mxu0 %v2439
    %v2441 = vand.u32 %v1953, 4294901760
    %v2442 = vsub.f32 %v1953, %v2441
    %2443 = vmatpush1.msra.mxu0 %v2442
    %v2444 = vand.u32 %v1956, 4294901760
    %v2445 = vsub.f32 %v1956, %v2444
    %2446 = vmatprep.subr.mxu0 %v2445
    %v2447 = vand.u32 %v1955, 4294901760
    %v2448 = vsub.f32 %v1955, %v2447
    %2449 = vmatpush1.msra.mxu0 %v2448
    %v2450 = vand.u32 %v1958, 4294901760
    %v2451 = vsub.f32 %v1958, %v2450
    %2452 = vmatprep.subr.mxu0 %v2451
    %v2453 = vand.u32 %v1957, 4294901760
    %v2454 = vsub.f32 %v1957, %v2453
    %2455 = vmatpush1.msra.mxu0 %v2454
    %v2456 = vand.u32 %v1960, 4294901760
    %v2457 = vsub.f32 %v1960, %v2456
    %2458 = vmatprep.subr.mxu0 %v2457
    %v2459 = vand.u32 %v1959, 4294901760
    %v2460 = vsub.f32 %v1959, %v2459
    %2461 = vmatpush1.msra.mxu0 %v2460
    %v2462 = vand.u32 %v1962, 4294901760
    %v2463 = vsub.f32 %v1962, %v2462
    %2464 = vmatprep.subr.mxu0 %v2463
    %v2465 = vand.u32 %v1961, 4294901760
    %v2466 = vsub.f32 %v1961, %v2465
    %2467 = vmatpush1.msra.mxu0 %v2466
    %v2468 = vand.u32 %v1964, 4294901760
    %v2469 = vsub.f32 %v1964, %v2468
    %2470 = vmatprep.subr.mxu0 %v2469
    %v2471 = vand.u32 %v1963, 4294901760
    %v2472 = vsub.f32 %v1963, %v2471
    %2473 = vmatpush1.msra.mxu0 %v2472
    %v2474 = vand.u32 %v1966, 4294901760
    %v2475 = vsub.f32 %v1966, %v2474
    %2476 = vmatprep.subr.mxu0 %v2475
    %v2477 = vand.u32 %v1965, 4294901760
    %v2478 = vsub.f32 %v1965, %v2477
    %2479 = vmatpush1.msra.mxu0 %v2478
    %2480 = vmatprep.subr.mxu0 0.0
    %2481 = vmatpush1.msra.mxu0 0.0
    %2482 = vmatprep.subr.mxu0 0.0
    %2483 = vmatpush1.msra.mxu0 0.0
    %2484 = vmatprep.subr.mxu0 0.0
    %2485 = vmatpush1.msra.mxu0 0.0
    %2486 = vmatprep.subr.mxu0 0.0
    %2487 = vmatpush1.msra.mxu0 0.0
    %2488 = vmatprep.subr.mxu0 0.0
    %2489 = vmatpush1.msra.mxu0 0.0
    %2490 = vmatprep.subr.mxu0 0.0
    %2491 = vmatpush1.msra.mxu0 0.0
    %2492 = vmatprep.subr.mxu0 0.0
    %2493 = vmatpush1.msra.mxu0 0.0
    %2494 = vmatprep.subr.mxu0 0.0
    %2495 = vmatpush1.msra.mxu0 0.0
    %2496 = vmatprep.subr.mxu0 0.0
    %2497 = vmatpush1.msra.mxu0 0.0
    %2498 = vmatprep.subr.mxu0 0.0
    %2499 = vmatpush1.msra.mxu0 0.0
    %2500 = vmatprep.subr.mxu0 0.0
    %2501 = vmatpush1.msra.mxu0 0.0
    %2502 = vmatprep.subr.mxu0 0.0
    %2503 = vmatpush1.msra.mxu0 0.0
    %2504 = vmatprep.subr.mxu0 0.0
    %2505 = vmatpush1.msra.mxu0 0.0
    %2506 = vmatprep.subr.mxu0 0.0
    %2507 = vmatpush1.msra.mxu0 0.0
    %2508 = vmatprep.subr.mxu0 0.0
    %2509 = vmatpush1.msra.mxu0 0.0
    %2510 = vmatprep.subr.mxu0 0.0
    %2511 = vmatpush1.msra.mxu0 0.0
    %2512 = vmatprep.subr.mxu0 0.0
    %2513 = vmatpush1.msra.mxu0 0.0
    %2514 = vmatprep.mubr.f32.mxu0 0.0
    %v2515 = vand.u32 %v1997, 4294901760
    %v2516 = vsub.f32 %v1997, %v2515
    %2517 = vmatmul.mubr.f32.gmra.mrb[0].mxu0 %v2516
    %v2518 = vpop.f32.mrb[0].mxu0
    %v2519 = vadd.f32 %v2365, %v2518
    %v2520 = vpop.f32.mrb[0].mxu0
    %v2521 = vadd.f32 %v2367, %v2520
    %2522 = vmatprep.mubr.f32.mxu0 0.0
    %v2523 = vand.u32 %v2000, 4294901760
    %v2524 = vsub.f32 %v2000, %v2523
    %2525 = vmatmul.mubr.f32.gmra.mrb[0].mxu0 %v2524
    %v2526 = vpop.f32.mrb[0].mxu0
    %v2527 = vadd.f32 %v2372, %v2526
    %v2528 = vpop.f32.mrb[0].mxu0
    %v2529 = vadd.f32 %v2374, %v2528
    %2530 = vmatprep.mubr.f32.mxu0 0.0
    %v2531 = vand.u32 %v2003, 4294901760
    %v2532 = vsub.f32 %v2003, %v2531
    %2533 = vmatmul.mubr.f32.gmra.mrb[0].mxu0 %v2532
    %v2534 = vpop.f32.mrb[0].mxu0
    %v2535 = vadd.f32 %v2379, %v2534
    %v2536 = vpop.f32.mrb[0].mxu0
    %v2537 = vadd.f32 %v2381, %v2536
    %2538 = vmatprep.mubr.f32.mxu0 0.0
    %v2539 = vand.u32 %v2006, 4294901760
    %v2540 = vsub.f32 %v2006, %v2539
    %2541 = vmatmul.mubr.f32.gmra.mrb[0].mxu0 %v2540
    %v2542 = vpop.f32.mrb[0].mxu0
    %v2543 = vadd.f32 %v2386, %v2542
    %v2544 = vpop.f32.mrb[0].mxu0
    %v2545 = vadd.f32 %v2388, %v2544
    %2546 = vdwg.mxu0
    %v2547 = vand.u32 %v1938, 4294901760
    %2548 = vmatprep.subr.mxu0 %v2547
    %v2549 = vand.u32 %v1937, 4294901760
    %2550 = vmatpush1.msra.mxu0 %v2549
    %v2551 = vand.u32 %v1940, 4294901760
    %2552 = vmatprep.subr.mxu0 %v2551
    %v2553 = vand.u32 %v1939, 4294901760
    %2554 = vmatpush1.msra.mxu0 %v2553
    %v2555 = vand.u32 %v1942, 4294901760
    %2556 = vmatprep.subr.mxu0 %v2555
    %v2557 = vand.u32 %v1941, 4294901760
    %2558 = vmatpush1.msra.mxu0 %v2557
    %v2559 = vand.u32 %v1944, 4294901760
    %2560 = vmatprep.subr.mxu0 %v2559
    %v2561 = vand.u32 %v1943, 4294901760
    %2562 = vmatpush1.msra.mxu0 %v2561
    %v2563 = vand.u32 %v1946, 4294901760
    %2564 = vmatprep.subr.mxu0 %v2563
    %v2565 = vand.u32 %v1945, 4294901760
    %2566 = vmatpush1.msra.mxu0 %v2565
    %v2567 = vand.u32 %v1948, 4294901760
    %2568 = vmatprep.subr.mxu0 %v2567
    %v2569 = vand.u32 %v1947, 4294901760
    %2570 = vmatpush1.msra.mxu0 %v2569
    %v2571 = vand.u32 %v1950, 4294901760
    %2572 = vmatprep.subr.mxu0 %v2571
    %v2573 = vand.u32 %v1949, 4294901760
    %2574 = vmatpush1.msra.mxu0 %v2573
    %v2575 = vand.u32 %v1952, 4294901760
    %2576 = vmatprep.subr.mxu0 %v2575
    %v2577 = vand.u32 %v1951, 4294901760
    %2578 = vmatpush1.msra.mxu0 %v2577
    %v2579 = vand.u32 %v1954, 4294901760
    %2580 = vmatprep.subr.mxu0 %v2579
    %v2581 = vand.u32 %v1953, 4294901760
    %2582 = vmatpush1.msra.mxu0 %v2581
    %v2583 = vand.u32 %v1956, 4294901760
    %2584 = vmatprep.subr.mxu0 %v2583
    %v2585 = vand.u32 %v1955, 4294901760
    %2586 = vmatpush1.msra.mxu0 %v2585
    %v2587 = vand.u32 %v1958, 4294901760
    %2588 = vmatprep.subr.mxu0 %v2587
    %v2589 = vand.u32 %v1957, 4294901760
    %2590 = vmatpush1.msra.mxu0 %v2589
    %v2591 = vand.u32 %v1960, 4294901760
    %2592 = vmatprep.subr.mxu0 %v2591
    %v2593 = vand.u32 %v1959, 4294901760
    %2594 = vmatpush1.msra.mxu0 %v2593
    %v2595 = vand.u32 %v1962, 4294901760
    %2596 = vmatprep.subr.mxu0 %v2595
    %v2597 = vand.u32 %v1961, 4294901760
    %2598 = vmatpush1.msra.mxu0 %v2597
    %v2599 = vand.u32 %v1964, 4294901760
    %2600 = vmatprep.subr.mxu0 %v2599
    %v2601 = vand.u32 %v1963, 4294901760
    %2602 = vmatpush1.msra.mxu0 %v2601
    %v2603 = vand.u32 %v1966, 4294901760
    %2604 = vmatprep.subr.mxu0 %v2603
    %v2605 = vand.u32 %v1965, 4294901760
    %2606 = vmatpush1.msra.mxu0 %v2605
    %2607 = vmatprep.subr.mxu0 0.0
    %2608 = vmatpush1.msra.mxu0 0.0
    %2609 = vmatprep.subr.mxu0 0.0
    %2610 = vmatpush1.msra.mxu0 0.0
    %2611 = vmatprep.subr.mxu0 0.0
    %2612 = vmatpush1.msra.mxu0 0.0
    %2613 = vmatprep.subr.mxu0 0.0
    %2614 = vmatpush1.msra.mxu0 0.0
    %2615 = vmatprep.subr.mxu0 0.0
    %2616 = vmatpush1.msra.mxu0 0.0
    %2617 = vmatprep.subr.mxu0 0.0
    %2618 = vmatpush1.msra.mxu0 0.0
    %2619 = vmatprep.subr.mxu0 0.0
    %2620 = vmatpush1.msra.mxu0 0.0
    %2621 = vmatprep.subr.mxu0 0.0
    %2622 = vmatpush1.msra.mxu0 0.0
    %2623 = vmatprep.subr.mxu0 0.0
    %2624 = vmatpush1.msra.mxu0 0.0
    %2625 = vmatprep.subr.mxu0 0.0
    %2626 = vmatpush1.msra.mxu0 0.0
    %2627 = vmatprep.subr.mxu0 0.0
    %2628 = vmatpush1.msra.mxu0 0.0
    %2629 = vmatprep.subr.mxu0 0.0
    %2630 = vmatpush1.msra.mxu0 0.0
    %2631 = vmatprep.subr.mxu0 0.0
    %2632 = vmatpush1.msra.mxu0 0.0
    %2633 = vmatprep.subr.mxu0 0.0
    %2634 = vmatpush1.msra.mxu0 0.0
    %2635 = vmatprep.subr.mxu0 0.0
    %2636 = vmatpush1.msra.mxu0 0.0
    %2637 = vmatprep.subr.mxu0 0.0
    %2638 = vmatpush1.msra.mxu0 0.0
    %2639 = vmatprep.subr.mxu0 0.0
    %2640 = vmatpush1.msra.mxu0 0.0
    %2641 = vmatprep.mubr.f32.mxu0 0.0
    %v2642 = vand.u32 %v1997, 4294901760
    %v2643 = vsub.f32 %v1997, %v2642
    %v2644 = vand.u32 %v2643, 4294901760
    %2645 = vmatmul.mubr.f32.gmra.mrb[0].mxu0 %v2644
    %v2646 = vpop.f32.mrb[0].mxu0
    %v2647 = vadd.f32 %v2519, %v2646
    %v2648 = vpop.f32.mrb[0].mxu0
    %v2649 = vadd.f32 %v2521, %v2648
    %2650 = vmatprep.mubr.f32.mxu0 0.0
    %v2651 = vand.u32 %v2000, 4294901760
    %v2652 = vsub.f32 %v2000, %v2651
    %v2653 = vand.u32 %v2652, 4294901760
    %2654 = vmatmul.mubr.f32.gmra.mrb[0].mxu0 %v2653
    %v2655 = vpop.f32.mrb[0].mxu0
    %v2656 = vadd.f32 %v2527, %v2655
    %v2657 = vpop.f32.mrb[0].mxu0
    %v2658 = vadd.f32 %v2529, %v2657
    %2659 = vmatprep.mubr.f32.mxu0 0.0
    %v2660 = vand.u32 %v2003, 4294901760
    %v2661 = vsub.f32 %v2003, %v2660
    %v2662 = vand.u32 %v2661, 4294901760
    %2663 = vmatmul.mubr.f32.gmra.mrb[0].mxu0 %v2662
    %v2664 = vpop.f32.mrb[0].mxu0
    %v2665 = vadd.f32 %v2535, %v2664
    %v2666 = vpop.f32.mrb[0].mxu0
    %v2667 = vadd.f32 %v2537, %v2666
    %2668 = vmatprep.mubr.f32.mxu0 0.0
    %v2669 = vand.u32 %v2006, 4294901760
    %v2670 = vsub.f32 %v2006, %v2669
    %v2671 = vand.u32 %v2670, 4294901760
    %2672 = vmatmul.mubr.f32.gmra.mrb[0].mxu0 %v2671
    %v2673 = vpop.f32.mrb[0].mxu0
    %v2674 = vadd.f32 %v2543, %v2673
    %v2675 = vpop.f32.mrb[0].mxu0
    %v2676 = vadd.f32 %v2545, %v2675
    %2677 = vdwg.mxu0
    %v2678 = vand.u32 %v1938, 4294901760
    %v2679 = vsub.f32 %v1938, %v2678
    %v2680 = vand.u32 %v2679, 4294901760
    %2681 = vmatprep.subr.mxu0 %v2680
    %v2682 = vand.u32 %v1937, 4294901760
    %v2683 = vsub.f32 %v1937, %v2682
    %v2684 = vand.u32 %v2683, 4294901760
    %2685 = vmatpush1.msra.mxu0 %v2684
    %v2686 = vand.u32 %v1940, 4294901760
    %v2687 = vsub.f32 %v1940, %v2686
    %v2688 = vand.u32 %v2687, 4294901760
    %2689 = vmatprep.subr.mxu0 %v2688
    %v2690 = vand.u32 %v1939, 4294901760
    %v2691 = vsub.f32 %v1939, %v2690
    %v2692 = vand.u32 %v2691, 4294901760
    %2693 = vmatpush1.msra.mxu0 %v2692
    %v2694 = vand.u32 %v1942, 4294901760
    %v2695 = vsub.f32 %v1942, %v2694
    %v2696 = vand.u32 %v2695, 4294901760
    %2697 = vmatprep.subr.mxu0 %v2696
    %v2698 = vand.u32 %v1941, 4294901760
    %v2699 = vsub.f32 %v1941, %v2698
    %v2700 = vand.u32 %v2699, 4294901760
    %2701 = vmatpush1.msra.mxu0 %v2700
    %v2702 = vand.u32 %v1944, 4294901760
    %v2703 = vsub.f32 %v1944, %v2702
    %v2704 = vand.u32 %v2703, 4294901760
    %2705 = vmatprep.subr.mxu0 %v2704
    %v2706 = vand.u32 %v1943, 4294901760
    %v2707 = vsub.f32 %v1943, %v2706
    %v2708 = vand.u32 %v2707, 4294901760
    %2709 = vmatpush1.msra.mxu0 %v2708
    %v2710 = vand.u32 %v1946, 4294901760
    %v2711 = vsub.f32 %v1946, %v2710
    %v2712 = vand.u32 %v2711, 4294901760
    %2713 = vmatprep.subr.mxu0 %v2712
    %v2714 = vand.u32 %v1945, 4294901760
    %v2715 = vsub.f32 %v1945, %v2714
    %v2716 = vand.u32 %v2715, 4294901760
    %2717 = vmatpush1.msra.mxu0 %v2716
    %v2718 = vand.u32 %v1948, 4294901760
    %v2719 = vsub.f32 %v1948, %v2718
    %v2720 = vand.u32 %v2719, 4294901760
    %2721 = vmatprep.subr.mxu0 %v2720
    %v2722 = vand.u32 %v1947, 4294901760
    %v2723 = vsub.f32 %v1947, %v2722
    %v2724 = vand.u32 %v2723, 4294901760
    %2725 = vmatpush1.msra.mxu0 %v2724
    %v2726 = vand.u32 %v1950, 4294901760
    %v2727 = vsub.f32 %v1950, %v2726
    %v2728 = vand.u32 %v2727, 4294901760
    %2729 = vmatprep.subr.mxu0 %v2728
    %v2730 = vand.u32 %v1949, 4294901760
    %v2731 = vsub.f32 %v1949, %v2730
    %v2732 = vand.u32 %v2731, 4294901760
    %2733 = vmatpush1.msra.mxu0 %v2732
    %v2734 = vand.u32 %v1952, 4294901760
    %v2735 = vsub.f32 %v1952, %v2734
    %v2736 = vand.u32 %v2735, 4294901760
    %2737 = vmatprep.subr.mxu0 %v2736
    %v2738 = vand.u32 %v1951, 4294901760
    %v2739 = vsub.f32 %v1951, %v2738
    %v2740 = vand.u32 %v2739, 4294901760
    %2741 = vmatpush1.msra.mxu0 %v2740
    %v2742 = vand.u32 %v1954, 4294901760
    %v2743 = vsub.f32 %v1954, %v2742
    %v2744 = vand.u32 %v2743, 4294901760
    %2745 = vmatprep.subr.mxu0 %v2744
    %v2746 = vand.u32 %v1953, 4294901760
    %v2747 = vsub.f32 %v1953, %v2746
    %v2748 = vand.u32 %v2747, 4294901760
    %2749 = vmatpush1.msra.mxu0 %v2748
    %v2750 = vand.u32 %v1956, 4294901760
    %v2751 = vsub.f32 %v1956, %v2750
    %v2752 = vand.u32 %v2751, 4294901760
    %2753 = vmatprep.subr.mxu0 %v2752
    %v2754 = vand.u32 %v1955, 4294901760
    %v2755 = vsub.f32 %v1955, %v2754
    %v2756 = vand.u32 %v2755, 4294901760
    %2757 = vmatpush1.msra.mxu0 %v2756
    %v2758 = vand.u32 %v1958, 4294901760
    %v2759 = vsub.f32 %v1958, %v2758
    %v2760 = vand.u32 %v2759, 4294901760
    %2761 = vmatprep.subr.mxu0 %v2760
    %v2762 = vand.u32 %v1957, 4294901760
    %v2763 = vsub.f32 %v1957, %v2762
    %v2764 = vand.u32 %v2763, 4294901760
    %2765 = vmatpush1.msra.mxu0 %v2764
    %v2766 = vand.u32 %v1960, 4294901760
    %v2767 = vsub.f32 %v1960, %v2766
    %v2768 = vand.u32 %v2767, 4294901760
    %2769 = vmatprep.subr.mxu0 %v2768
    %v2770 = vand.u32 %v1959, 4294901760
    %v2771 = vsub.f32 %v1959, %v2770
    %v2772 = vand.u32 %v2771, 4294901760
    %2773 = vmatpush1.msra.mxu0 %v2772
    %v2774 = vand.u32 %v1962, 4294901760
    %v2775 = vsub.f32 %v1962, %v2774
    %v2776 = vand.u32 %v2775, 4294901760
    %2777 = vmatprep.subr.mxu0 %v2776
    %v2778 = vand.u32 %v1961, 4294901760
    %v2779 = vsub.f32 %v1961, %v2778
    %v2780 = vand.u32 %v2779, 4294901760
    %2781 = vmatpush1.msra.mxu0 %v2780
    %v2782 = vand.u32 %v1964, 4294901760
    %v2783 = vsub.f32 %v1964, %v2782
    %v2784 = vand.u32 %v2783, 4294901760
    %2785 = vmatprep.subr.mxu0 %v2784
    %v2786 = vand.u32 %v1963, 4294901760
    %v2787 = vsub.f32 %v1963, %v2786
    %v2788 = vand.u32 %v2787, 4294901760
    %2789 = vmatpush1.msra.mxu0 %v2788
    %v2790 = vand.u32 %v1966, 4294901760
    %v2791 = vsub.f32 %v1966, %v2790
    %v2792 = vand.u32 %v2791, 4294901760
    %2793 = vmatprep.subr.mxu0 %v2792
    %v2794 = vand.u32 %v1965, 4294901760
    %v2795 = vsub.f32 %v1965, %v2794
    %v2796 = vand.u32 %v2795, 4294901760
    %2797 = vmatpush1.msra.mxu0 %v2796
    %2798 = vmatprep.subr.mxu0 0.0
    %2799 = vmatpush1.msra.mxu0 0.0
    %2800 = vmatprep.subr.mxu0 0.0
    %2801 = vmatpush1.msra.mxu0 0.0
    %2802 = vmatprep.subr.mxu0 0.0
    %2803 = vmatpush1.msra.mxu0 0.0
    %2804 = vmatprep.subr.mxu0 0.0
    %2805 = vmatpush1.msra.mxu0 0.0
    %2806 = vmatprep.subr.mxu0 0.0
    %2807 = vmatpush1.msra.mxu0 0.0
    %2808 = vmatprep.subr.mxu0 0.0
    %2809 = vmatpush1.msra.mxu0 0.0
    %2810 = vmatprep.subr.mxu0 0.0
    %2811 = vmatpush1.msra.mxu0 0.0
    %2812 = vmatprep.subr.mxu0 0.0
    %2813 = vmatpush1.msra.mxu0 0.0
    %2814 = vmatprep.subr.mxu0 0.0
    %2815 = vmatpush1.msra.mxu0 0.0
    %2816 = vmatprep.subr.mxu0 0.0
    %2817 = vmatpush1.msra.mxu0 0.0
    %2818 = vmatprep.subr.mxu0 0.0
    %2819 = vmatpush1.msra.mxu0 0.0
    %2820 = vmatprep.subr.mxu0 0.0
    %2821 = vmatpush1.msra.mxu0 0.0
    %2822 = vmatprep.subr.mxu0 0.0
    %2823 = vmatpush1.msra.mxu0 0.0
    %2824 = vmatprep.subr.mxu0 0.0
    %2825 = vmatpush1.msra.mxu0 0.0
    %2826 = vmatprep.subr.mxu0 0.0
    %2827 = vmatpush1.msra.mxu0 0.0
    %2828 = vmatprep.subr.mxu0 0.0
    %2829 = vmatpush1.msra.mxu0 0.0
    %2830 = vmatprep.subr.mxu0 0.0
    %2831 = vmatpush1.msra.mxu0 0.0
    %2832 = vmatprep.mubr.f32.mxu0 0.0
    %v2833 = vand.u32 %v1997, 4294901760
    %2834 = vmatmul.mubr.f32.gmra.mrb[0].mxu0 %v2833
    %v2835 = vpop.f32.mrb[0].mxu0
    %v2836 = vadd.f32 %v2647, %v2835
    %v2837 = vpop.f32.mrb[0].mxu0
    %v2838 = vadd.f32 %v2649, %v2837
    %2839 = vmatprep.mubr.f32.mxu0 0.0
    %v2840 = vand.u32 %v2000, 4294901760
    %2841 = vmatmul.mubr.f32.gmra.mrb[0].mxu0 %v2840
    %v2842 = vpop.f32.mrb[0].mxu0
    %v2843 = vadd.f32 %v2656, %v2842
    %v2844 = vpop.f32.mrb[0].mxu0
    %v2845 = vadd.f32 %v2658, %v2844
    %2846 = vmatprep.mubr.f32.mxu0 0.0
    %v2847 = vand.u32 %v2003, 4294901760
    %2848 = vmatmul.mubr.f32.gmra.mrb[0].mxu0 %v2847
    %v2849 = vpop.f32.mrb[0].mxu0
    %v2850 = vadd.f32 %v2665, %v2849
    %v2851 = vpop.f32.mrb[0].mxu0
    %v2852 = vadd.f32 %v2667, %v2851
    %2853 = vmatprep.mubr.f32.mxu0 0.0
    %v2854 = vand.u32 %v2006, 4294901760
    %2855 = vmatmul.mubr.f32.gmra.mrb[0].mxu0 %v2854
    %v2856 = vpop.f32.mrb[0].mxu0
    %v2857 = vadd.f32 %v2674, %v2856
    %v2858 = vpop.f32.mrb[0].mxu0
    %v2859 = vadd.f32 %v2676, %v2858
    %2860 = vdwg.mxu0
    %v2861 = vand.u32 %v1938, 4294901760
    %2862 = vmatprep.subr.mxu0 %v2861
    %v2863 = vand.u32 %v1937, 4294901760
    %2864 = vmatpush1.msra.mxu0 %v2863
    %v2865 = vand.u32 %v1940, 4294901760
    %2866 = vmatprep.subr.mxu0 %v2865
    %v2867 = vand.u32 %v1939, 4294901760
    %2868 = vmatpush1.msra.mxu0 %v2867
    %v2869 = vand.u32 %v1942, 4294901760
    %2870 = vmatprep.subr.mxu0 %v2869
    %v2871 = vand.u32 %v1941, 4294901760
    %2872 = vmatpush1.msra.mxu0 %v2871
    %v2873 = vand.u32 %v1944, 4294901760
    %2874 = vmatprep.subr.mxu0 %v2873
    %v2875 = vand.u32 %v1943, 4294901760
    %2876 = vmatpush1.msra.mxu0 %v2875
    %v2877 = vand.u32 %v1946, 4294901760
    %2878 = vmatprep.subr.mxu0 %v2877
    %v2879 = vand.u32 %v1945, 4294901760
    %2880 = vmatpush1.msra.mxu0 %v2879
    %v2881 = vand.u32 %v1948, 4294901760
    %2882 = vmatprep.subr.mxu0 %v2881
    %v2883 = vand.u32 %v1947, 4294901760
    %2884 = vmatpush1.msra.mxu0 %v2883
    %v2885 = vand.u32 %v1950, 4294901760
    %2886 = vmatprep.subr.mxu0 %v2885
    %v2887 = vand.u32 %v1949, 4294901760
    %2888 = vmatpush1.msra.mxu0 %v2887
    %v2889 = vand.u32 %v1952, 4294901760
    %2890 = vmatprep.subr.mxu0 %v2889
    %v2891 = vand.u32 %v1951, 4294901760
    %2892 = vmatpush1.msra.mxu0 %v2891
    %v2893 = vand.u32 %v1954, 4294901760
    %2894 = vmatprep.subr.mxu0 %v2893
    %v2895 = vand.u32 %v1953, 4294901760
    %2896 = vmatpush1.msra.mxu0 %v2895
    %v2897 = vand.u32 %v1956, 4294901760
    %2898 = vmatprep.subr.mxu0 %v2897
    %v2899 = vand.u32 %v1955, 4294901760
    %2900 = vmatpush1.msra.mxu0 %v2899
    %v2901 = vand.u32 %v1958, 4294901760
    %2902 = vmatprep.subr.mxu0 %v2901
    %v2903 = vand.u32 %v1957, 4294901760
    %2904 = vmatpush1.msra.mxu0 %v2903
    %v2905 = vand.u32 %v1960, 4294901760
    %2906 = vmatprep.subr.mxu0 %v2905
    %v2907 = vand.u32 %v1959, 4294901760
    %2908 = vmatpush1.msra.mxu0 %v2907
    %v2909 = vand.u32 %v1962, 4294901760
    %2910 = vmatprep.subr.mxu0 %v2909
    %v2911 = vand.u32 %v1961, 4294901760
    %2912 = vmatpush1.msra.mxu0 %v2911
    %v2913 = vand.u32 %v1964, 4294901760
    %2914 = vmatprep.subr.mxu0 %v2913
    %v2915 = vand.u32 %v1963, 4294901760
    %2916 = vmatpush1.msra.mxu0 %v2915
    %v2917 = vand.u32 %v1966, 4294901760
    %2918 = vmatprep.subr.mxu0 %v2917
    %v2919 = vand.u32 %v1965, 4294901760
    %2920 = vmatpush1.msra.mxu0 %v2919
    %2921 = vmatprep.subr.mxu0 0.0
    %2922 = vmatpush1.msra.mxu0 0.0
    %2923 = vmatprep.subr.mxu0 0.0
    %2924 = vmatpush1.msra.mxu0 0.0
    %2925 = vmatprep.subr.mxu0 0.0
    %2926 = vmatpush1.msra.mxu0 0.0
    %2927 = vmatprep.subr.mxu0 0.0
    %2928 = vmatpush1.msra.mxu0 0.0
    %2929 = vmatprep.subr.mxu0 0.0
    %2930 = vmatpush1.msra.mxu0 0.0
    %2931 = vmatprep.subr.mxu0 0.0
    %2932 = vmatpush1.msra.mxu0 0.0
    %2933 = vmatprep.subr.mxu0 0.0
    %2934 = vmatpush1.msra.mxu0 0.0
    %2935 = vmatprep.subr.mxu0 0.0
    %2936 = vmatpush1.msra.mxu0 0.0
    %2937 = vmatprep.subr.mxu0 0.0
    %2938 = vmatpush1.msra.mxu0 0.0
    %2939 = vmatprep.subr.mxu0 0.0
    %2940 = vmatpush1.msra.mxu0 0.0
    %2941 = vmatprep.subr.mxu0 0.0
    %2942 = vmatpush1.msra.mxu0 0.0
    %2943 = vmatprep.subr.mxu0 0.0
    %2944 = vmatpush1.msra.mxu0 0.0
    %2945 = vmatprep.subr.mxu0 0.0
    %2946 = vmatpush1.msra.mxu0 0.0
    %2947 = vmatprep.subr.mxu0 0.0
    %2948 = vmatpush1.msra.mxu0 0.0
    %2949 = vmatprep.subr.mxu0 0.0
    %2950 = vmatpush1.msra.mxu0 0.0
    %2951 = vmatprep.subr.mxu0 0.0
    %2952 = vmatpush1.msra.mxu0 0.0
    %2953 = vmatprep.subr.mxu0 0.0
    %2954 = vmatpush1.msra.mxu0 0.0
    %2955 = vmatprep.mubr.f32.mxu0 0.0
    %v2956 = vand.u32 %v1997, 4294901760
    %2957 = vmatmul.mubr.f32.gmra.mrb[0].mxu0 %v2956
    %v2958 = vpop.f32.mrb[0].mxu0
    %v2959 = vadd.f32 %v2836, %v2958
    %v2960 = vpop.f32.mrb[0].mxu0
    %v2961 = vadd.f32 %v2838, %v2960
    %2962 = vmatprep.mubr.f32.mxu0 0.0
    %v2963 = vand.u32 %v2000, 4294901760
    %2964 = vmatmul.mubr.f32.gmra.mrb[0].mxu0 %v2963
    %v2965 = vpop.f32.mrb[0].mxu0
    %v2966 = vadd.f32 %v2843, %v2965
    %v2967 = vpop.f32.mrb[0].mxu0
    %v2968 = vadd.f32 %v2845, %v2967
    %2969 = vmatprep.mubr.f32.mxu0 0.0
    %v2970 = vand.u32 %v2003, 4294901760
    %2971 = vmatmul.mubr.f32.gmra.mrb[0].mxu0 %v2970
    %v2972 = vpop.f32.mrb[0].mxu0
    %v2973 = vadd.f32 %v2850, %v2972
    %v2974 = vpop.f32.mrb[0].mxu0
    %v2975 = vadd.f32 %v2852, %v2974
    %2976 = vmatprep.mubr.f32.mxu0 0.0
    %v2977 = vand.u32 %v2006, 4294901760
    %2978 = vmatmul.mubr.f32.gmra.mrb[0].mxu0 %v2977
    %v2979 = vpop.f32.mrb[0].mxu0
    %v2980 = vadd.f32 %v2857, %v2979
    %v2981 = vpop.f32.mrb[0].mxu0
    %v2982 = vadd.f32 %v2859, %v2981
    %2983 = vdwg.mxu0
    %v2984 = vtanh.pop %v2959
    %v2985 = vtanh.pop %v2961
    %v2986 = vtanh.pop %v2966
    %v2987 = vtanh.pop %v2968
    %v2988 = vtanh.pop %v2973
    %v2989 = vtanh.pop %v2975
    %v2990 = vtanh.pop %v2980
    %v2991 = vtanh.pop %v2982
    %v2992 = vld [vmem:[%s5] sm:$0xff]
    %v2993 = vld [vmem:[%s5 + $0x8] sm:$0xff]
    %v2994 = vld [vmem:[%s5 + $0x10] sm:$0xff]
    %v2995 = vld [vmem:[%s5 + $0x18] sm:$0xff]
    %2997 = vset.pattern.permute.xlu0 0
    %2998 = vperm.xlu0 %2997, %v2992
    %v2999 = vpop.permute.xlu0 %2998
    %3002 = vset.pattern.permute.xlu0 0
    %3003 = vperm.xlu0 %3002, %v2993
    %v3004 = vpop.permute.xlu0 %3003
    %3007 = vset.pattern.permute.xlu0 0
    %3008 = vperm.xlu0 %3007, %v2994
    %v3009 = vpop.permute.xlu0 %3008
    %3012 = vset.pattern.permute.xlu0 0
    %3013 = vperm.xlu0 %3012, %v2995
    %v3014 = vpop.permute.xlu0 %3013
    %v3016 = vmul.f32 %v2999, %v2984
    %v3017 = vmul.f32 %v2999, %v2985
    %v3018 = vmul.f32 %v3004, %v2986
    %v3019 = vmul.f32 %v3004, %v2987
    %v3020 = vmul.f32 %v3009, %v2988
    %v3021 = vmul.f32 %v3009, %v2989
    %v3022 = vmul.f32 %v3014, %v2990
    %v3023 = vmul.f32 %v3014, %v2991
    %v3024 = vadd.f32 %v3016, %v3018
    %v3025 = vadd.f32 %v3024, %v3020
    %v3026 = vadd.f32 %v3025, %v3022
    %v3027 = vrot.slane %v3026, 4
    %v3028 = vadd.f32 %v3026, %v3027
    %v3029 = vrot.slane %v3028, 2
    %v3030 = vadd.f32 %v3028, %v3029
    %v3031 = vrot.slane %v3030, 1
    %v3032 = vadd.f32 %v3030, %v3031
    %v3033 = vadd.f32 %v3017, %v3019
    %v3034 = vadd.f32 %v3033, %v3021
    %v3035 = vadd.f32 %v3034, %v3023
    %v3036 = vrot.slane %v3035, 4
    %v3037 = vadd.f32 %v3035, %v3036
    %v3038 = vrot.slane %v3037, 2
    %v3039 = vadd.f32 %v3037, %v3038
    %v3040 = vrot.slane %v3039, 1
    %v3041 = vadd.f32 %v3039, %v3040
    %v3042 = vld [vmem:[#allocation2] sm:$0x1]
    %3044 = vset.pattern.permute.xlu0 0
    %3045 = vperm.xlu0 %3044, %v3042
    %v3046 = vpop.permute.xlu0 %3045
    %v3048 = vlaneseq
    %v3049 = vshrl.u32 %v3048, 7
    %v3050 = vsub.s32 0, %v3049
    %v3051 = vrot.slane %v3046, %v3050
    %v3052 = vadd.f32 %v3032, %v3051
    %v3053 = vadd.f32 %v3041, %v3051
    %v3056 = vcombine.low %v3052, %v3053
    %v3058 = vunpack.c.l.s4 1966171168
    %v3059 = vunpack.c.0.s8 %v3058
    %v3060 = vlaneseq
    %v3061 = vshrl.u32 %v3060, 7
    %v3062 = vsub.s32 %v3059, %v3061
    %v3063 = vrot.slane %v3056, %v3062
    %v3065 = vunpack.c.l.s4 1966171168
    %v3066 = vunpack.c.0.s8 %v3065
    %v3067 = vlaneseq
    %v3068 = vshrl.u32 %v3067, 7
    %v3069 = vsub.s32 %v3066, %v3068
    %v3070 = vrot.slane %v3063, %v3069
    %v3072 = vlaneseq
    %vm3073 = vcmp.ge.s32.totalorder %v3072, 0
    %vm3074 = vcmp.lt.s32.totalorder %v3072, 256
    %vm3075 = vmand %vm3073, %vm3074
    %3076 = vst.msk [vmem:[#allocation8] sm:$0x3] %vm3075, %v3070
    // Predicated region
    $region38: #{_lambda_.1} parent=1 // pred_check
      _
    $region39: #{_lambda_.1} parent=1 // pred_check_branch
      %3078 = sbr.rel (0) target = $region41
    $region40: #{_lambda_.1} parent=1 // pred_region
      %s3080 = ssub.s32 32, 32
      %3081 = vsyncadd [#allocation5], %s3080
      %s3083 = sshll.u32 [#allocation8], 4
      %s3084 = int_to_ptr.vmem [resolvable:$true] %s3083
      %3086 = dma.vmem_to_hbm [thread:$0]  %s3084, 32, %s7, [#allocation5]
    $region41: #{_lambda_.1} parent=1 // pred_fallthru
      _
    // Predicated region
    $region42: #{_lambda_.1} parent=1 // pred_check
      _
    $region43: #{_lambda_.1} parent=1 // pred_check_branch
      %3088 = sbr.rel (0) target = $region45
    $region44: #{_lambda_.1} parent=1 // pred_region
      %3089 = dma.done [#allocation5], 32
    $region45: #{_lambda_.1} parent=1 // pred_fallthru
      _
    %3090 = vsyncpa [#allocation4], 1
    %3091 = vsyncpa [#allocation7], 1
    %3092 = vsyncpa [#allocation5], 1

</llo_original>
